<compile_context>
chip_gen: v5e
topology: v5e:2x2
jax: 0.10.0
libtpu: 0.0.40
codegen_flags: <defaults>
</compile_context>

<pallas_src>
import math

import jax
import jax.numpy as jnp
from jax.experimental import pallas as pl
from jax.experimental.pallas import tpu as pltpu

_HI = jax.lax.Precision.HIGHEST
_LANES = 128


def _sigmoid_eup(v):
    # sigmoid via tanh: runs on the EUP slot, avoids exp(-v) inf intermediates
    # and the multi-op VPU f32 divide.
    return 0.5 * (jnp.tanh(0.5 * v) + 1.0)


# ----------------------------------------------------------------------------------
# Pallas kernel: full DecoderRNN_attn forward step (batch 1), fully fused.
#
#   x_ref    : (1, 1)  SMEM        scalar token input[0]
#   h_ref    : (NL, FD) VMEM       previous hidden (aliased with hout)
#   enc_ref  : (MAXLEN, FD) VMEM   encoder_outputs
#   w_ref    : (3+2*NL, FD, 128)   zero-lane-padded weight slab
#              [0] attn hidden block (FD, MAXLEN)   [1] attn_combine block (FD, FD)
#              [2] fc (FD, NC)
#              [3+2l] GRU W_ih layer l (FD, 3*FD r|z|n)   [4+2l] GRU W_hh layer l
#   misc_ref : (5+2*NL, 128)       zero-lane-padded rows:
#              0 wa_x, 1 ba, 2 wc_x, 3 bc, 4 bfc, 5+l b_ih[l], 5+NL+l b_hh[l]
# ----------------------------------------------------------------------------------
def decoder_attn_kernel(x_ref, h_ref, enc_ref, w_ref, misc_ref,
                        out_ref, hout_ref, attn_ref):
    num_layers, fd = h_ref.shape
    max_length = enc_ref.shape[0]
    n_classes = out_ref.shape[1]

    x = x_ref[0, 0]                      # scalar token (sreg path)
    h_all = h_ref[...]                   # read once up-front (h aliases hout)

    wa_x = misc_ref[0:1, 0:max_length]
    ba = misc_ref[1:2, 0:max_length]
    wc_x = misc_ref[2:3, 0:fd]
    bc = misc_ref[3:4, 0:fd]
    bfc = misc_ref[4:5, 0:n_classes]

    # ---- attn_weights = softmax(attn(cat(input, hidden[0]))) ----------------
    h0 = h_all[0:1, :]
    logits = (jnp.dot(h0, w_ref[0][:, 0:max_length],
                      precision=_HI, preferred_element_type=jnp.float32)
              + x * wa_x + ba)                                   # (1, MAXLEN)
    m = jnp.max(logits, axis=1, keepdims=True)
    e = jnp.exp(logits - m)
    s = jnp.sum(e, axis=1, keepdims=True)
    inv = pl.reciprocal(s, approx=True)
    inv = inv * (2.0 - s * inv)          # one Newton step -> full f32 accuracy
    attn_w = e * inv
    attn_ref[...] = attn_w

    # ---- attn_applied = bmm(attn_weights, encoder_outputs) ------------------
    attn_applied = jnp.dot(attn_w, enc_ref[...],
                           precision=_HI, preferred_element_type=jnp.float32)

    # ---- attn_combine + ReLU -------------------------------------------------
    comb = (jnp.dot(attn_applied, w_ref[1][:, 0:fd],
                    precision=_HI, preferred_element_type=jnp.float32)
            + x * wc_x + bc)                                     # (1, FD)
    layer_in = jnp.maximum(comb, 0.0)

    # ---- multi-layer GRU cell, single time step (2 merged dots per layer) ----
    new_rows = []
    for l in range(num_layers):
        h_prev = h_all[l:l + 1, :]
        gi = jnp.dot(layer_in, w_ref[3 + 2 * l],
                     precision=_HI, preferred_element_type=jnp.float32) \
            + misc_ref[5 + l:6 + l, :]                           # (1, 128)
        gh = jnp.dot(h_prev, w_ref[4 + 2 * l],
                     precision=_HI, preferred_element_type=jnp.float32) \
            + misc_ref[5 + num_layers + l:6 + num_layers + l, :]  # (1, 128)
        i_r, i_z, i_n = gi[:, 0:fd], gi[:, fd:2 * fd], gi[:, 2 * fd:3 * fd]
        h_r, h_z, h_n = gh[:, 0:fd], gh[:, fd:2 * fd], gh[:, 2 * fd:3 * fd]
        r = _sigmoid_eup(i_r + h_r)
        z = _sigmoid_eup(i_z + h_z)
        n = jnp.tanh(i_n + r * h_n)
        h_new = (1.0 - z) * n + z * h_prev                       # (1, FD)
        new_rows.append(h_new)
        # TODO(synk): PyTorch applies dropout(p=0.4) between GRU layers in train
        # mode only; eval semantics (identity) are implemented here.
        layer_in = h_new
    hout_ref[...] = jnp.concatenate(new_rows, axis=0)            # single store

    # ---- fc + log_softmax ----------------------------------------------------
    fc = jnp.dot(layer_in, w_ref[2][:, 0:n_classes],
                 precision=_HI, preferred_element_type=jnp.float32) + bfc
    m2 = jnp.max(fc, axis=1, keepdims=True)
    lse = jnp.log(jnp.sum(jnp.exp(fc - m2), axis=1, keepdims=True)) + m2
    out_ref[...] = fc - lse


# ----------------------------------------------------------------------------------
# Wrapper
# ----------------------------------------------------------------------------------
def _pallas_step(x, h, enc, wslab, misc, n_classes):
    num_layers, fd = h.shape
    max_length = enc.shape[0]
    vmem = pl.BlockSpec(memory_space=pltpu.MemorySpace.VMEM)
    smem = pl.BlockSpec(memory_space=pltpu.MemorySpace.SMEM)
    return pl.pallas_call(
        decoder_attn_kernel,
        out_shape=(
            jax.ShapeDtypeStruct((1, n_classes), jnp.float32),
            jax.ShapeDtypeStruct((num_layers, fd), jnp.float32),
            jax.ShapeDtypeStruct((1, max_length), jnp.float32),
        ),
        in_specs=[smem, vmem, vmem, vmem, vmem],
        out_specs=(vmem, vmem, vmem),
        input_output_aliases={1: 1},   # hidden in-buffer reused for new hidden
    )(x, h, enc, wslab, misc)


def decoder_rnn_attn_forward(input_t, hidden_t, encoder_outputs, wslab, misc, n_classes):
    """Mirrors DecoderRNN_attn.forward.

    input_t          : (1, 1, 1)
    hidden_t         : (num_layers, 1, feature_dim)
    encoder_outputs  : (max_length, feature_dim)
    returns (log_probs (1, n_classes),
             new_hidden (num_layers, 1, feature_dim),
             attn_weights (1, max_length))
    """
    x = input_t[0].astype(jnp.float32)                        # (1, 1)
    h = hidden_t[:, 0, :].astype(jnp.float32)                 # (NL, FD)
    out, h_new, attn_w = _pallas_step(
        x, h, encoder_outputs.astype(jnp.float32), wslab, misc, n_classes)
    return out, h_new[:, None, :], attn_w


# ----------------------------------------------------------------------------------
# Parameter packing (host side, done once)
# ----------------------------------------------------------------------------------
def _pad_lanes(a, width=_LANES):
    return jnp.pad(a, ((0, 0), (0, width - a.shape[-1])))


def pack_params(p, feature_dim, n_classes, num_layers, max_length):
    # Weight slab: (3 + 2*NL, FD, 128), zero-padded lanes.
    rows = [_pad_lanes(p["wa_h"]), _pad_lanes(p["wc_h"]), _pad_lanes(p["wfc"])]
    for l in range(num_layers):
        wih = jnp.concatenate([p["wih"][3 * l + g] for g in range(3)], axis=1)
        whh = jnp.concatenate([p["whh"][3 * l + g] for g in range(3)], axis=1)
        rows += [_pad_lanes(wih), _pad_lanes(whh)]
    wslab = jnp.stack(rows, axis=0).astype(jnp.float32)

    # Misc slab: (5 + 2*NL, 128) — biases and scalar-input weight columns.
    mrows = [_pad_lanes(p["wa_x"]), _pad_lanes(p["ba"]),
             _pad_lanes(p["wc_x"]), _pad_lanes(p["bc"]), _pad_lanes(p["bfc"])]
    for l in range(num_layers):
        bih = jnp.concatenate([p["bih"][3 * l + g] for g in range(3)], axis=1)
        mrows.append(_pad_lanes(bih))
    for l in range(num_layers):
        bhh = jnp.concatenate([p["bhh"][3 * l + g] for g in range(3)], axis=1)
        mrows.append(_pad_lanes(bhh))
    misc = jnp.concatenate(mrows, axis=0).astype(jnp.float32)
    return wslab, misc


# ----------------------------------------------------------------------------------
# Pure-JAX reference (same math as the PyTorch forward) for validation.
# ----------------------------------------------------------------------------------
def reference_forward(input_t, hidden_t, encoder_outputs, params):
    hp = jax.lax.Precision.HIGHEST
    x = input_t[0]                                            # (1, 1)
    h = hidden_t[:, 0, :]                                     # (NL, FD)
    num_layers, fd = h.shape

    wa = jnp.concatenate([params["wa_x"], params["wa_h"]], axis=0)     # (FD+1, MAXLEN)
    cat1 = jnp.concatenate([x, h[0:1]], axis=1)
    attn_w = jax.nn.softmax(jnp.dot(cat1, wa, precision=hp) + params["ba"], axis=1)
    attn_applied = jnp.dot(attn_w, encoder_outputs, precision=hp)

    wc = jnp.concatenate([params["wc_x"], params["wc_h"]], axis=0)     # (FD+1, FD)
    comb = jnp.dot(jnp.concatenate([x, attn_applied], axis=1), wc, precision=hp) + params["bc"]
    layer_in = jax.nn.relu(comb)

    new_h = []
    for l in range(num_layers):
        h_prev = h[l:l + 1]
        i_r = jnp.dot(layer_in, params["wih"][3 * l + 0], precision=hp) + params["bih"][3 * l + 0]
        i_z = jnp.dot(layer_in, params["wih"][3 * l + 1], precision=hp) + params["bih"][3 * l + 1]
        i_n = jnp.dot(layer_in, params["wih"][3 * l + 2], precision=hp) + params["bih"][3 * l + 2]
        h_r = jnp.dot(h_prev,   params["whh"][3 * l + 0], precision=hp) + params["bhh"][3 * l + 0]
        h_z = jnp.dot(h_prev,   params["whh"][3 * l + 1], precision=hp) + params["bhh"][3 * l + 1]
        h_n = jnp.dot(h_prev,   params["whh"][3 * l + 2], precision=hp) + params["bhh"][3 * l + 2]
        r = jax.nn.sigmoid(i_r + h_r)
        z = jax.nn.sigmoid(i_z + h_z)
        n = jnp.tanh(i_n + r * h_n)
        h_new = (1.0 - z) * n + z * h_prev
        new_h.append(h_new)
        layer_in = h_new

    fc = jnp.dot(layer_in, params["wfc"], precision=hp) + params["bfc"]
    out = jax.nn.log_softmax(fc, axis=1)
    return out, jnp.concatenate(new_h, axis=0)[:, None, :], attn_w


# ----------------------------------------------------------------------------------
# Deterministic synthetic parameters (PyTorch-default-style uniform init).
# ----------------------------------------------------------------------------------
def build_params(key, feature_dim, n_classes, num_layers, max_length):
    keys = iter(jax.random.split(key, 16))
    nxt = lambda: next(keys)

    def uni(k, shape, fan_in):
        b = 1.0 / math.sqrt(fan_in)
        return jax.random.uniform(k, shape, jnp.float32, -b, b)

    fd = feature_dim
    p = {}
    # attn: Linear(fd+1 -> max_length), split into scalar-input column + hidden block
    p["wa_x"] = uni(nxt(), (1, max_length), fd + 1)
    p["wa_h"] = uni(nxt(), (fd, max_length), fd + 1)
    p["ba"] = uni(nxt(), (1, max_length), fd + 1)
    # attn_combine: Linear(fd+1 -> fd)
    p["wc_x"] = uni(nxt(), (1, fd), fd + 1)
    p["wc_h"] = uni(nxt(), (fd, fd), fd + 1)
    p["bc"] = uni(nxt(), (1, fd), fd + 1)
    # GRU, per layer per gate (r, z, n), weights pre-transposed to (in, out)
    p["wih"] = uni(nxt(), (num_layers * 3, fd, fd), fd)
    p["whh"] = uni(nxt(), (num_layers * 3, fd, fd), fd)
    p["bih"] = uni(nxt(), (num_layers * 3, 1, fd), fd)
    p["bhh"] = uni(nxt(), (num_layers * 3, 1, fd), fd)
    # fc: Linear(fd -> n_classes)
    p["wfc"] = uni(nxt(), (fd, n_classes), fd)
    p["bfc"] = uni(nxt(), (1, n_classes), fd)
    return p


# ----------------------------------------------------------------------------------
if __name__ == "__main__":
    feature_dim, n_classes, num_layers, max_length = 32, 4, 2, 8
    key = jax.random.PRNGKey(0)
    k_in, k_hid, k_enc, k_par = jax.random.split(key, 4)

    input_t = jax.random.normal(k_in, (1, 1, 1), jnp.float32)
    hidden_t = 0.1 * jax.random.normal(k_hid, (num_layers, 1, feature_dim), jnp.float32)
    encoder_outputs = jax.random.normal(k_enc, (max_length, feature_dim), jnp.float32)
    params = build_params(k_par, feature_dim, n_classes, num_layers, max_length)
    wslab, misc = pack_params(params, feature_dim, n_classes, num_layers, max_length)

    fwd = jax.jit(lambda i, h, e: decoder_rnn_attn_forward(i, h, e, wslab, misc, n_classes))
    out, h_new, attn_w = fwd(input_t, hidden_t, encoder_outputs)
    out, h_new, attn_w = jax.block_until_ready((out, h_new, attn_w))

    # shape checks (match the PyTorch module's return shapes)
    assert out.shape == (1, n_classes), out.shape
    assert h_new.shape == (num_layers, 1, feature_dim), h_new.shape
    assert attn_w.shape == (1, max_length), attn_w.shape

    # numeric check against a pure-JAX reference of the same forward math
    r_out, r_h, r_attn = reference_forward(input_t, hidden_t, encoder_outputs, params)
    assert bool(jnp.allclose(out, r_out, atol=1e-4, rtol=1e-4))
    assert bool(jnp.allclose(h_new, r_h, atol=1e-4, rtol=1e-4))
    assert bool(jnp.allclose(attn_w, r_attn, atol=1e-4, rtol=1e-4))
    assert bool(jnp.all(jnp.isfinite(out)))
    assert bool(jnp.allclose(jnp.sum(jnp.exp(out), axis=1), 1.0, atol=1e-4))

    print("KERNEL_OK")
</pallas_src>

<mosaic_0001>
module attributes {stable_mosaic.version = 11 : i64} {
  func.func @decoder_attn_kernel(%arg0: memref<1x1xf32, #tpu.memory_space<smem>>, %arg1: memref<2x32xf32, #tpu.memory_space<vmem>>, %arg2: memref<8x32xf32, #tpu.memory_space<vmem>>, %arg3: memref<7x32x128xf32, #tpu.memory_space<vmem>>, %arg4: memref<9x128xf32, #tpu.memory_space<vmem>>, %arg5: memref<1x4xf32, #tpu.memory_space<vmem>>, %arg6: memref<2x32xf32, #tpu.memory_space<vmem>>, %arg7: memref<1x8xf32, #tpu.memory_space<vmem>>) attributes {dimension_semantics = [], scalar_prefetch = 0 : i64, scratch_operands = 0 : i64, tpu.core_type = #tpu.core_type<tc>} {
    %c0 = arith.constant 0 : index
    %c0_0 = arith.constant 0 : index
    %0 = memref.load %arg0[%c0, %c0_0] : memref<1x1xf32, #tpu.memory_space<smem>>
    %c0_1 = arith.constant 0 : index
    %c0_2 = arith.constant 0 : index
    %1 = vector.load %arg1[%c0_1, %c0_2] : memref<2x32xf32, #tpu.memory_space<vmem>>, vector<2x32xf32>
    %c0_3 = arith.constant 0 : index
    %c0_4 = arith.constant 0 : index
    %2 = vector.load %arg4[%c0_3, %c0_4] : memref<9x128xf32, #tpu.memory_space<vmem>>, vector<1x8xf32>
    %c1 = arith.constant 1 : index
    %c0_5 = arith.constant 0 : index
    %3 = vector.load %arg4[%c1, %c0_5] : memref<9x128xf32, #tpu.memory_space<vmem>>, vector<1x8xf32>
    %c2 = arith.constant 2 : index
    %c0_6 = arith.constant 0 : index
    %4 = vector.load %arg4[%c2, %c0_6] : memref<9x128xf32, #tpu.memory_space<vmem>>, vector<1x32xf32>
    %c3 = arith.constant 3 : index
    %c0_7 = arith.constant 0 : index
    %5 = vector.load %arg4[%c3, %c0_7] : memref<9x128xf32, #tpu.memory_space<vmem>>, vector<1x32xf32>
    %c4 = arith.constant 4 : index
    %c0_8 = arith.constant 0 : index
    %6 = vector.load %arg4[%c4, %c0_8] : memref<9x128xf32, #tpu.memory_space<vmem>>, vector<1x4xf32>
    %7 = vector.extract_strided_slice %1 {offsets = [0, 0], sizes = [1, 32], strides = [1, 1]} : vector<2x32xf32> to vector<1x32xf32>
    %c0_9 = arith.constant 0 : index
    %c0_10 = arith.constant 0 : index
    %c0_11 = arith.constant 0 : index
    %8 = vector.load %arg3[%c0_9, %c0_10, %c0_11] : memref<7x32x128xf32, #tpu.memory_space<vmem>>, vector<1x32x128xf32>
    %9 = vector.shape_cast %8 : vector<1x32x128xf32> to vector<32x128xf32>
    %10 = vector.extract_strided_slice %9 {offsets = [0, 0], sizes = [32, 8], strides = [1, 1]} : vector<32x128xf32> to vector<32x8xf32>
    %cst = arith.constant dense<0.000000e+00> : vector<1x8xf32>
    %11 = tpu.matmul %7, %10, %cst {dimension_numbers = #tpu.dot_dimension_numbers<[1], [0], [0], [1], [0, 0, 1, 1], [], []>, precision = #tpu.contract_precision<fp32>} : vector<1x32xf32>, vector<32x8xf32>, vector<1x8xf32> -> vector<1x8xf32>
    %12 = vector.broadcast %0 : f32 to vector<1x8xf32>
    %13 = arith.mulf %12, %2 : vector<1x8xf32>
    %14 = arith.addf %11, %13 : vector<1x8xf32>
    %15 = arith.addf %14, %3 : vector<1x8xf32>
    %cst_12 = arith.constant dense<0xFF800000> : vector<1xf32>
    %16 = vector.multi_reduction <maximumf>, %15, %cst_12 [1] : vector<1x8xf32> to vector<1xf32>
    %17 = vector.shape_cast %16 : vector<1xf32> to vector<1x1xf32>
    %18 = vector.broadcast %17 : vector<1x1xf32> to vector<1x8xf32>
    %19 = arith.subf %15, %18 : vector<1x8xf32>
    %20 = math.exp %19 : vector<1x8xf32>
    %cst_13 = arith.constant dense<0.000000e+00> : vector<1xf32>
    %21 = vector.multi_reduction <add>, %20, %cst_13 [1] : vector<1x8xf32> to vector<1xf32>
    %22 = vector.shape_cast %21 : vector<1xf32> to vector<1x1xf32>
    %23 = tpu.reciprocal %22 {approx = true} : vector<1x1xf32> -> vector<1x1xf32>
    %24 = arith.mulf %22, %23 : vector<1x1xf32>
    %cst_14 = arith.constant 2.000000e+00 : f32
    %25 = vector.broadcast %cst_14 : f32 to vector<1x1xf32>
    %26 = arith.subf %25, %24 : vector<1x1xf32>
    %27 = arith.mulf %23, %26 : vector<1x1xf32>
    %28 = vector.broadcast %27 : vector<1x1xf32> to vector<1x8xf32>
    %29 = arith.mulf %20, %28 : vector<1x8xf32>
    %c0_15 = arith.constant 0 : index
    %c0_16 = arith.constant 0 : index
    %30 = vector.load %arg7[%c0_15, %c0_16] : memref<1x8xf32, #tpu.memory_space<vmem>>, vector<1x8xf32>
    tpu.vector_store %arg7[%c0_15, %c0_16], %29 {strides = array<i32>} : memref<1x8xf32, #tpu.memory_space<vmem>>, vector<1x8xf32>,
    %c0_17 = arith.constant 0 : index
    %c0_18 = arith.constant 0 : index
    %31 = vector.load %arg2[%c0_17, %c0_18] : memref<8x32xf32, #tpu.memory_space<vmem>>, vector<8x32xf32>
    %cst_19 = arith.constant dense<0.000000e+00> : vector<1x32xf32>
    %32 = tpu.matmul %29, %31, %cst_19 {dimension_numbers = #tpu.dot_dimension_numbers<[1], [0], [0], [1], [0, 0, 1, 1], [], []>, precision = #tpu.contract_precision<fp32>} : vector<1x8xf32>, vector<8x32xf32>, vector<1x32xf32> -> vector<1x32xf32>
    %c1_20 = arith.constant 1 : index
    %c0_21 = arith.constant 0 : index
    %c0_22 = arith.constant 0 : index
    %33 = vector.load %arg3[%c1_20, %c0_21, %c0_22] : memref<7x32x128xf32, #tpu.memory_space<vmem>>, vector<1x32x128xf32>
    %34 = vector.shape_cast %33 : vector<1x32x128xf32> to vector<32x128xf32>
    %35 = vector.extract_strided_slice %34 {offsets = [0, 0], sizes = [32, 32], strides = [1, 1]} : vector<32x128xf32> to vector<32x32xf32>
    %cst_23 = arith.constant dense<0.000000e+00> : vector<1x32xf32>
    %36 = tpu.matmul %32, %35, %cst_23 {dimension_numbers = #tpu.dot_dimension_numbers<[1], [0], [0], [1], [0, 0, 1, 1], [], []>, precision = #tpu.contract_precision<fp32>} : vector<1x32xf32>, vector<32x32xf32>, vector<1x32xf32> -> vector<1x32xf32>
    %37 = vector.broadcast %0 : f32 to vector<1x32xf32>
    %38 = arith.mulf %37, %4 : vector<1x32xf32>
    %39 = arith.addf %36, %38 : vector<1x32xf32>
    %40 = arith.addf %39, %5 : vector<1x32xf32>
    %cst_24 = arith.constant 0.000000e+00 : f32
    %41 = vector.broadcast %cst_24 : f32 to vector<1x32xf32>
    %42 = arith.maximumf %40, %41 : vector<1x32xf32>
    %43 = vector.extract_strided_slice %1 {offsets = [0, 0], sizes = [1, 32], strides = [1, 1]} : vector<2x32xf32> to vector<1x32xf32>
    %c3_25 = arith.constant 3 : index
    %c0_26 = arith.constant 0 : index
    %c0_27 = arith.constant 0 : index
    %44 = vector.load %arg3[%c3_25, %c0_26, %c0_27] : memref<7x32x128xf32, #tpu.memory_space<vmem>>, vector<1x32x128xf32>
    %45 = vector.shape_cast %44 : vector<1x32x128xf32> to vector<32x128xf32>
    %cst_28 = arith.constant dense<0.000000e+00> : vector<1x128xf32>
    %46 = tpu.matmul %42, %45, %cst_28 {dimension_numbers = #tpu.dot_dimension_numbers<[1], [0], [0], [1], [0, 0, 1, 1], [], []>, precision = #tpu.contract_precision<fp32>} : vector<1x32xf32>, vector<32x128xf32>, vector<1x128xf32> -> vector<1x128xf32>
    %c5 = arith.constant 5 : index
    %c0_29 = arith.constant 0 : index
    %47 = vector.load %arg4[%c5, %c0_29] : memref<9x128xf32, #tpu.memory_space<vmem>>, vector<1x128xf32>
    %48 = arith.addf %46, %47 : vector<1x128xf32>
    %c4_30 = arith.constant 4 : index
    %c0_31 = arith.constant 0 : index
    %c0_32 = arith.constant 0 : index
    %49 = vector.load %arg3[%c4_30, %c0_31, %c0_32] : memref<7x32x128xf32, #tpu.memory_space<vmem>>, vector<1x32x128xf32>
    %50 = vector.shape_cast %49 : vector<1x32x128xf32> to vector<32x128xf32>
    %cst_33 = arith.constant dense<0.000000e+00> : vector<1x128xf32>
    %51 = tpu.matmul %43, %50, %cst_33 {dimension_numbers = #tpu.dot_dimension_numbers<[1], [0], [0], [1], [0, 0, 1, 1], [], []>, precision = #tpu.contract_precision<fp32>} : vector<1x32xf32>, vector<32x128xf32>, vector<1x128xf32> -> vector<1x128xf32>
    %c7 = arith.constant 7 : index
    %c0_34 = arith.constant 0 : index
    %52 = vector.load %arg4[%c7, %c0_34] : memref<9x128xf32, #tpu.memory_space<vmem>>, vector<1x128xf32>
    %53 = arith.addf %51, %52 : vector<1x128xf32>
    %54 = vector.extract_strided_slice %48 {offsets = [0, 0], sizes = [1, 32], strides = [1, 1]} : vector<1x128xf32> to vector<1x32xf32>
    %55 = vector.extract_strided_slice %48 {offsets = [0, 32], sizes = [1, 32], strides = [1, 1]} : vector<1x128xf32> to vector<1x32xf32>
    %56 = vector.extract_strided_slice %48 {offsets = [0, 64], sizes = [1, 32], strides = [1, 1]} : vector<1x128xf32> to vector<1x32xf32>
    %57 = vector.extract_strided_slice %53 {offsets = [0, 0], sizes = [1, 32], strides = [1, 1]} : vector<1x128xf32> to vector<1x32xf32>
    %58 = vector.extract_strided_slice %53 {offsets = [0, 32], sizes = [1, 32], strides = [1, 1]} : vector<1x128xf32> to vector<1x32xf32>
    %59 = vector.extract_strided_slice %53 {offsets = [0, 64], sizes = [1, 32], strides = [1, 1]} : vector<1x128xf32> to vector<1x32xf32>
    %60 = arith.addf %54, %57 : vector<1x32xf32>
    %cst_35 = arith.constant 5.000000e-01 : f32
    %61 = vector.broadcast %cst_35 : f32 to vector<1x32xf32>
    %62 = arith.mulf %61, %60 : vector<1x32xf32>
    %63 = math.tanh %62 : vector<1x32xf32>
    %cst_36 = arith.constant 1.000000e+00 : f32
    %64 = vector.broadcast %cst_36 : f32 to vector<1x32xf32>
    %65 = arith.addf %63, %64 : vector<1x32xf32>
    %cst_37 = arith.constant 5.000000e-01 : f32
    %66 = vector.broadcast %cst_37 : f32 to vector<1x32xf32>
    %67 = arith.mulf %66, %65 : vector<1x32xf32>
    %68 = arith.addf %55, %58 : vector<1x32xf32>
    %cst_38 = arith.constant 5.000000e-01 : f32
    %69 = vector.broadcast %cst_38 : f32 to vector<1x32xf32>
    %70 = arith.mulf %69, %68 : vector<1x32xf32>
    %71 = math.tanh %70 : vector<1x32xf32>
    %cst_39 = arith.constant 1.000000e+00 : f32
    %72 = vector.broadcast %cst_39 : f32 to vector<1x32xf32>
    %73 = arith.addf %71, %72 : vector<1x32xf32>
    %cst_40 = arith.constant 5.000000e-01 : f32
    %74 = vector.broadcast %cst_40 : f32 to vector<1x32xf32>
    %75 = arith.mulf %74, %73 : vector<1x32xf32>
    %76 = arith.mulf %67, %59 : vector<1x32xf32>
    %77 = arith.addf %56, %76 : vector<1x32xf32>
    %78 = math.tanh %77 : vector<1x32xf32>
    %cst_41 = arith.constant 1.000000e+00 : f32
    %79 = vector.broadcast %cst_41 : f32 to vector<1x32xf32>
    %80 = arith.subf %79, %75 : vector<1x32xf32>
    %81 = arith.mulf %80, %78 : vector<1x32xf32>
    %82 = arith.mulf %75, %43 : vector<1x32xf32>
    %83 = arith.addf %81, %82 : vector<1x32xf32>
    %84 = vector.extract_strided_slice %1 {offsets = [1, 0], sizes = [1, 32], strides = [1, 1]} : vector<2x32xf32> to vector<1x32xf32>
    %c5_42 = arith.constant 5 : index
    %c0_43 = arith.constant 0 : index
    %c0_44 = arith.constant 0 : index
    %85 = vector.load %arg3[%c5_42, %c0_43, %c0_44] : memref<7x32x128xf32, #tpu.memory_space<vmem>>, vector<1x32x128xf32>
    %86 = vector.shape_cast %85 : vector<1x32x128xf32> to vector<32x128xf32>
    %cst_45 = arith.constant dense<0.000000e+00> : vector<1x128xf32>
    %87 = tpu.matmul %83, %86, %cst_45 {dimension_numbers = #tpu.dot_dimension_numbers<[1], [0], [0], [1], [0, 0, 1, 1], [], []>, precision = #tpu.contract_precision<fp32>} : vector<1x32xf32>, vector<32x128xf32>, vector<1x128xf32> -> vector<1x128xf32>
    %c6 = arith.constant 6 : index
    %c0_46 = arith.constant 0 : index
    %88 = vector.load %arg4[%c6, %c0_46] : memref<9x128xf32, #tpu.memory_space<vmem>>, vector<1x128xf32>
    %89 = arith.addf %87, %88 : vector<1x128xf32>
    %c6_47 = arith.constant 6 : index
    %c0_48 = arith.constant 0 : index
    %c0_49 = arith.constant 0 : index
    %90 = vector.load %arg3[%c6_47, %c0_48, %c0_49] : memref<7x32x128xf32, #tpu.memory_space<vmem>>, vector<1x32x128xf32>
    %91 = vector.shape_cast %90 : vector<1x32x128xf32> to vector<32x128xf32>
    %cst_50 = arith.constant dense<0.000000e+00> : vector<1x128xf32>
    %92 = tpu.matmul %84, %91, %cst_50 {dimension_numbers = #tpu.dot_dimension_numbers<[1], [0], [0], [1], [0, 0, 1, 1], [], []>, precision = #tpu.contract_precision<fp32>} : vector<1x32xf32>, vector<32x128xf32>, vector<1x128xf32> -> vector<1x128xf32>
    %c8 = arith.constant 8 : index
    %c0_51 = arith.constant 0 : index
    %93 = vector.load %arg4[%c8, %c0_51] : memref<9x128xf32, #tpu.memory_space<vmem>>, vector<1x128xf32>
    %94 = arith.addf %92, %93 : vector<1x128xf32>
    %95 = vector.extract_strided_slice %89 {offsets = [0, 0], sizes = [1, 32], strides = [1, 1]} : vector<1x128xf32> to vector<1x32xf32>
    %96 = vector.extract_strided_slice %89 {offsets = [0, 32], sizes = [1, 32], strides = [1, 1]} : vector<1x128xf32> to vector<1x32xf32>
    %97 = vector.extract_strided_slice %89 {offsets = [0, 64], sizes = [1, 32], strides = [1, 1]} : vector<1x128xf32> to vector<1x32xf32>
    %98 = vector.extract_strided_slice %94 {offsets = [0, 0], sizes = [1, 32], strides = [1, 1]} : vector<1x128xf32> to vector<1x32xf32>
    %99 = vector.extract_strided_slice %94 {offsets = [0, 32], sizes = [1, 32], strides = [1, 1]} : vector<1x128xf32> to vector<1x32xf32>
    %100 = vector.extract_strided_slice %94 {offsets = [0, 64], sizes = [1, 32], strides = [1, 1]} : vector<1x128xf32> to vector<1x32xf32>
    %101 = arith.addf %95, %98 : vector<1x32xf32>
    %cst_52 = arith.constant 5.000000e-01 : f32
    %102 = vector.broadcast %cst_52 : f32 to vector<1x32xf32>
    %103 = arith.mulf %102, %101 : vector<1x32xf32>
    %104 = math.tanh %103 : vector<1x32xf32>
    %cst_53 = arith.constant 1.000000e+00 : f32
    %105 = vector.broadcast %cst_53 : f32 to vector<1x32xf32>
    %106 = arith.addf %104, %105 : vector<1x32xf32>
    %cst_54 = arith.constant 5.000000e-01 : f32
    %107 = vector.broadcast %cst_54 : f32 to vector<1x32xf32>
    %108 = arith.mulf %107, %106 : vector<1x32xf32>
    %109 = arith.addf %96, %99 : vector<1x32xf32>
    %cst_55 = arith.constant 5.000000e-01 : f32
    %110 = vector.broadcast %cst_55 : f32 to vector<1x32xf32>
    %111 = arith.mulf %110, %109 : vector<1x32xf32>
    %112 = math.tanh %111 : vector<1x32xf32>
    %cst_56 = arith.constant 1.000000e+00 : f32
    %113 = vector.broadcast %cst_56 : f32 to vector<1x32xf32>
    %114 = arith.addf %112, %113 : vector<1x32xf32>
    %cst_57 = arith.constant 5.000000e-01 : f32
    %115 = vector.broadcast %cst_57 : f32 to vector<1x32xf32>
    %116 = arith.mulf %115, %114 : vector<1x32xf32>
    %117 = arith.mulf %108, %100 : vector<1x32xf32>
    %118 = arith.addf %97, %117 : vector<1x32xf32>
    %119 = math.tanh %118 : vector<1x32xf32>
    %cst_58 = arith.constant 1.000000e+00 : f32
    %120 = vector.broadcast %cst_58 : f32 to vector<1x32xf32>
    %121 = arith.subf %120, %116 : vector<1x32xf32>
    %122 = arith.mulf %121, %119 : vector<1x32xf32>
    %123 = arith.mulf %116, %84 : vector<1x32xf32>
    %124 = arith.addf %122, %123 : vector<1x32xf32>
    %125 = tpu.concatenate %83, %124 in 0 : vector<1x32xf32>, vector<1x32xf32> -> vector<2x32xf32>
    %c0_59 = arith.constant 0 : index
    %c0_60 = arith.constant 0 : index
    %126 = vector.load %arg6[%c0_59, %c0_60] : memref<2x32xf32, #tpu.memory_space<vmem>>, vector<2x32xf32>
    tpu.vector_store %arg6[%c0_59, %c0_60], %125 {strides = array<i32>} : memref<2x32xf32, #tpu.memory_space<vmem>>, vector<2x32xf32>,
    %c2_61 = arith.constant 2 : index
    %c0_62 = arith.constant 0 : index
    %c0_63 = arith.constant 0 : index
    %127 = vector.load %arg3[%c2_61, %c0_62, %c0_63] : memref<7x32x128xf32, #tpu.memory_space<vmem>>, vector<1x32x128xf32>
    %128 = vector.shape_cast %127 : vector<1x32x128xf32> to vector<32x128xf32>
    %129 = vector.extract_strided_slice %128 {offsets = [0, 0], sizes = [32, 4], strides = [1, 1]} : vector<32x128xf32> to vector<32x4xf32>
    %cst_64 = arith.constant dense<0.000000e+00> : vector<1x4xf32>
    %130 = tpu.matmul %124, %129, %cst_64 {dimension_numbers = #tpu.dot_dimension_numbers<[1], [0], [0], [1], [0, 0, 1, 1], [], []>, precision = #tpu.contract_precision<fp32>} : vector<1x32xf32>, vector<32x4xf32>, vector<1x4xf32> -> vector<1x4xf32>
    %131 = arith.addf %130, %6 : vector<1x4xf32>
    %cst_65 = arith.constant dense<0xFF800000> : vector<1xf32>
    %132 = vector.multi_reduction <maximumf>, %131, %cst_65 [1] : vector<1x4xf32> to vector<1xf32>
    %133 = vector.shape_cast %132 : vector<1xf32> to vector<1x1xf32>
    %134 = vector.broadcast %133 : vector<1x1xf32> to vector<1x4xf32>
    %135 = arith.subf %131, %134 : vector<1x4xf32>
    %136 = math.exp %135 : vector<1x4xf32>
    %cst_66 = arith.constant dense<0.000000e+00> : vector<1xf32>
    %137 = vector.multi_reduction <add>, %136, %cst_66 [1] : vector<1x4xf32> to vector<1xf32>
    %138 = vector.shape_cast %137 : vector<1xf32> to vector<1x1xf32>
    %139 = math.log %138 : vector<1x1xf32>
    %140 = arith.addf %139, %133 : vector<1x1xf32>
    %141 = vector.broadcast %140 : vector<1x1xf32> to vector<1x4xf32>
    %142 = arith.subf %131, %141 : vector<1x4xf32>
    %c0_67 = arith.constant 0 : index
    %c0_68 = arith.constant 0 : index
    %143 = vector.load %arg5[%c0_67, %c0_68] : memref<1x4xf32, #tpu.memory_space<vmem>>, vector<1x4xf32>
    tpu.vector_store %arg5[%c0_67, %c0_68], %142 {strides = array<i32>} : memref<1x4xf32, #tpu.memory_space<vmem>>, vector<1x4xf32>,
    return
  }
}

</mosaic_0001>

<llo_original>
// kernel: _lambda_.1
$region0: #{_lambda_.1}
  #allocation0 [shape = 'u32[]', space=smem, size = 0x4, offset = 0x4, fixed_abs, tag = 'smem constant byte address 0x4 - core index']
  #allocation1 [shape = 'u32[72,128]{1,0:T(1,128)}', space=vmem, size = 0x9000, scoped, tag = 'internal scratch']
  #allocation2 [shape = 'f32[1,1]{1,0:T(1,128)S(6)}', space=smem, size = 0x200, scoped, tag = 'scoped memory for _lambda_.1']
  %s0 = inlined_call_operand.<no memory space> [shape: f32[1,1], index: 0, kind: input, shape index: {}]
  %s1 = inlined_call_operand.vmem [shape: f32[2,32], index: 1, kind: input, shape index: {}, may-alias: {1,6}]
  %s2 = inlined_call_operand.hbm [shape: f32[8,32], index: 2, kind: input, shape index: {}]
  %s3 = inlined_call_operand.hbm [shape: f32[7,32,128], index: 3, kind: input, shape index: {}]
  %s4 = inlined_call_operand.hbm [shape: f32[9,128], index: 4, kind: input, shape index: {}]
  %s5 = inlined_call_operand.hbm [shape: f32[1,4], index: 5, kind: output, shape index: {0}]
  %s6 = inlined_call_operand.vmem [shape: f32[2,32], index: 6, kind: output, shape index: {1}, may-alias: {1,6}]
  %s7 = inlined_call_operand.hbm [shape: f32[1,8], index: 7, kind: output, shape index: {2}]
  %8 = xla_tuple %s5, %s6, %s7
  %s9 = sld [smem:[#allocation0]]
  $region58: #{_lambda_.1} parent=0
    _
  %s11 = ssub.s32 1, %s9
  %s12 = scalar_select 0, %s11, %s9
  %13 = sst [smem:[#allocation2]] %s0
  $region1: #{_lambda_.1} parent=0
    #allocation3 [shape = 'u8[4096]{0}', space=vmem, size = 0x1000, scoped, tag = 'input window, operand 2, single buffered']
    #allocation4 [shape = 's32[1]{0}', space=sflag, size = 0x4, scoped, tag = 'scoped memory for _lambda_.1']
    #allocation5 [shape = 's32[1]{0}', space=sflag, size = 0x4, scoped, tag = 'scoped memory for _lambda_.1']
    #allocation6 [shape = 'u8[114688]{0}', space=vmem, size = 0x1c000, scoped, tag = 'input window, operand 3, single buffered']
    #allocation7 [shape = 's32[1]{0}', space=sflag, size = 0x4, scoped, tag = 'scoped memory for _lambda_.1']
    #allocation8 [shape = 'u8[8192]{0}', space=vmem, size = 0x2000, scoped, tag = 'input window, operand 4, single buffered']
    #allocation9 [shape = 'u8[512]{0}', space=vmem, size = 0x400, scoped, tag = 'output window, operand 0, single buffered']
    #allocation10 [shape = 'u8[512]{0}', space=vmem, size = 0x400, scoped, tag = 'output window, operand 2, single buffered']
    #allocation11 [shape = 's32[1]{0}', space=sflag, size = 0x4, scoped, tag = 'scoped memory for _lambda_.1']
    %14 = vsyncpa [#allocation4], 0
    %15 = vsyncpa [#allocation7], 0
    %16 = vsyncpa [#allocation5], 0
    %17 = vsyncpa [#allocation11], 0
    // Predicated region
    $region2: #{_lambda_.1} parent=1 // pred_check
      _
    $region3: #{_lambda_.1} parent=1 // pred_check_branch
      %19 = sbr.rel (0) target = $region5
    $region4: #{_lambda_.1} parent=1 // pred_region
      _
    $region5: #{_lambda_.1} parent=1 // pred_fallthru
      _
    // Predicated region
    $region6: #{_lambda_.1} parent=1 // pred_check
      _
    $region7: #{_lambda_.1} parent=1 // pred_check_branch
      %21 = sbr.rel (0) target = $region9
    $region8: #{_lambda_.1} parent=1 // pred_region
      _
    $region9: #{_lambda_.1} parent=1 // pred_fallthru
      _
    // Predicated region
    $region10: #{_lambda_.1} parent=1 // pred_check
      _
    $region11: #{_lambda_.1} parent=1 // pred_check_branch
      %23 = sbr.rel (0) target = $region13
    $region12: #{_lambda_.1} parent=1 // pred_region
      %25 = vsyncadd [#allocation4], 0
      %s27 = sshll.u32 %s2, 4
      %s28 = int_to_ptr.hbm [resolvable:$true] %s27
      %s29 = sshll.u32 [#allocation3], 4
      %s30 = int_to_ptr.vmem [resolvable:$true] %s29
      %32 = dma.hbm_to_vmem [thread:$0]  %s28, 128, %s30, [#allocation4]
    $region13: #{_lambda_.1} parent=1 // pred_fallthru
      _
    // Predicated region
    $region14: #{_lambda_.1} parent=1 // pred_check
      _
    $region15: #{_lambda_.1} parent=1 // pred_check_branch
      %34 = sbr.rel (0) target = $region17
    $region16: #{_lambda_.1} parent=1 // pred_region
      %36 = vsyncadd [#allocation7], 0
      %s37 = sshll.u32 %s3, 4
      %s38 = int_to_ptr.hbm [resolvable:$true] %s37
      %s39 = sshll.u32 [#allocation6], 4
      %s40 = int_to_ptr.vmem [resolvable:$true] %s39
      %45 = dma.hbm_to_vmem [thread:$0]  %s38, 3584, %s40, [#allocation7], 128, 128, 8
    $region17: #{_lambda_.1} parent=1 // pred_fallthru
      _
    // Predicated region
    $region18: #{_lambda_.1} parent=1 // pred_check
      _
    $region19: #{_lambda_.1} parent=1 // pred_check_branch
      %47 = sbr.rel (0) target = $region21
    $region20: #{_lambda_.1} parent=1 // pred_region
      %49 = vsyncadd [#allocation7], 0
      %s50 = sshll.u32 %s4, 4
      %s51 = int_to_ptr.hbm [resolvable:$true] %s50
      %s52 = sshll.u32 [#allocation8], 4
      %s53 = int_to_ptr.vmem [resolvable:$true] %s52
      %58 = dma.hbm_to_vmem [thread:$0]  %s51, 256, %s53, [#allocation7], 128, 128, 8
    $region21: #{_lambda_.1} parent=1 // pred_fallthru
      _
    // Predicated region
    $region22: #{_lambda_.1} parent=1 // pred_check
      _
    $region23: #{_lambda_.1} parent=1 // pred_check_branch
      %60 = sbr.rel (0) target = $region25
    $region24: #{_lambda_.1} parent=1 // pred_region
      %62 = dma.done [#allocation4], 128
    $region25: #{_lambda_.1} parent=1 // pred_fallthru
      _
    // Predicated region
    $region26: #{_lambda_.1} parent=1 // pred_check
      _
    $region27: #{_lambda_.1} parent=1 // pred_check_branch
      %64 = sbr.rel (0) target = $region29
    $region28: #{_lambda_.1} parent=1 // pred_region
      %66 = dma.done [#allocation7], 3584
    $region29: #{_lambda_.1} parent=1 // pred_fallthru
      _
    // Predicated region
    $region30: #{_lambda_.1} parent=1 // pred_check
      _
    $region31: #{_lambda_.1} parent=1 // pred_check_branch
      %68 = sbr.rel (0) target = $region33
    $region32: #{_lambda_.1} parent=1 // pred_region
      %70 = dma.done [#allocation7], 256
    $region33: #{_lambda_.1} parent=1 // pred_fallthru
      _
    %s71 = sld [smem:[#allocation2]]
    %v72 = vld [vmem:[%s1] sm:$0x3]
    %v73 = vld [vmem:[#allocation8] sm:$0x1]
    %v74 = vld [vmem:[#allocation8 + $0x1] sm:$0x1]
    %v75 = vld [vmem:[#allocation8 + $0x2] sm:$0x1]
    %v76 = vld [vmem:[#allocation8 + $0x3] sm:$0x1]
    %v77 = vld [vmem:[#allocation8 + $0x4] sm:$0x1]
    %v78 = vld [vmem:[#allocation6] sm:$0xff]
    %v79 = vld [vmem:[#allocation6 + $0x8] sm:$0xff]
    %v80 = vld [vmem:[#allocation6 + $0x10] sm:$0xff]
    %v81 = vld [vmem:[#allocation6 + $0x18] sm:$0xff]
    %v82 = vstv %s71
    %v83 = vmul.f32 %v82, %v73
    %vm84 = vcmask 261120
    %v86 = vsel %vm84, %v72, 0
    %88 = vmatpush.msra.mxu0 0.0
    %89 = vmatpush.msra.mxu0 0.0
    %90 = vmatpush.msra.mxu0 0.0
    %91 = vmatpush.msra.mxu0 0.0
    %92 = vmatpush.msra.mxu0 0.0
    %93 = vmatpush.msra.mxu0 0.0
    %94 = vmatpush.msra.mxu0 0.0
    %95 = vmatpush.msra.mxu0 0.0
    %96 = vmatpush.msra.mxu0 0.0
    %97 = vmatpush.msra.mxu0 0.0
    %98 = vmatpush.msra.mxu0 0.0
    %99 = vmatpush.msra.mxu0 0.0
    %v100 = vand.u32 %v81, 4294901760
    %101 = vmatpush.msra.mxu0 %v100
    %v102 = vand.u32 %v80, 4294901760
    %103 = vmatpush.msra.mxu0 %v102
    %v104 = vand.u32 %v79, 4294901760
    %105 = vmatpush.msra.mxu0 %v104
    %v106 = vand.u32 %v78, 4294901760
    %107 = vmatpush.msra.mxu0 %v106
    %v108 = vand.u32 %v86, 4294901760
    %v109 = vsub.f32 %v86, %v108
    %v110 = vand.u32 %v109, 4294901760
    %v111 = vsub.f32 %v109, %v110
    %v112 = vand.u32 %v111, 4294901760
    %113 = vmatmul.f32.gmra.mxu0 %v112
    %v114 = vpop.f32.mrf.mxu0
    %v115 = vadd.f32 %v83, %v114
    %116 = vdwg.mxu0
    %117 = vmatpush.msra.mxu0 0.0
    %118 = vmatpush.msra.mxu0 0.0
    %119 = vmatpush.msra.mxu0 0.0
    %120 = vmatpush.msra.mxu0 0.0
    %121 = vmatpush.msra.mxu0 0.0
    %122 = vmatpush.msra.mxu0 0.0
    %123 = vmatpush.msra.mxu0 0.0
    %124 = vmatpush.msra.mxu0 0.0
    %125 = vmatpush.msra.mxu0 0.0
    %126 = vmatpush.msra.mxu0 0.0
    %127 = vmatpush.msra.mxu0 0.0
    %128 = vmatpush.msra.mxu0 0.0
    %v129 = vand.u32 %v81, 4294901760
    %v130 = vsub.f32 %v81, %v129
    %v131 = vand.u32 %v130, 4294901760
    %v132 = vsub.f32 %v130, %v131
    %v133 = vand.u32 %v132, 4294901760
    %134 = vmatpush.msra.mxu0 %v133
    %v135 = vand.u32 %v80, 4294901760
    %v136 = vsub.f32 %v80, %v135
    %v137 = vand.u32 %v136, 4294901760
    %v138 = vsub.f32 %v136, %v137
    %v139 = vand.u32 %v138, 4294901760
    %140 = vmatpush.msra.mxu0 %v139
    %v141 = vand.u32 %v79, 4294901760
    %v142 = vsub.f32 %v79, %v141
    %v143 = vand.u32 %v142, 4294901760
    %v144 = vsub.f32 %v142, %v143
    %v145 = vand.u32 %v144, 4294901760
    %146 = vmatpush.msra.mxu0 %v145
    %v147 = vand.u32 %v78, 4294901760
    %v148 = vsub.f32 %v78, %v147
    %v149 = vand.u32 %v148, 4294901760
    %v150 = vsub.f32 %v148, %v149
    %v151 = vand.u32 %v150, 4294901760
    %152 = vmatpush.msra.mxu0 %v151
    %v153 = vand.u32 %v86, 4294901760
    %154 = vmatmul.f32.gmra.mxu0 %v153
    %v155 = vpop.f32.mrf.mxu0
    %v156 = vadd.f32 %v115, %v155
    %157 = vdwg.mxu0
    %158 = vmatpush.msra.mxu0 0.0
    %159 = vmatpush.msra.mxu0 0.0
    %160 = vmatpush.msra.mxu0 0.0
    %161 = vmatpush.msra.mxu0 0.0
    %162 = vmatpush.msra.mxu0 0.0
    %163 = vmatpush.msra.mxu0 0.0
    %164 = vmatpush.msra.mxu0 0.0
    %165 = vmatpush.msra.mxu0 0.0
    %166 = vmatpush.msra.mxu0 0.0
    %167 = vmatpush.msra.mxu0 0.0
    %168 = vmatpush.msra.mxu0 0.0
    %169 = vmatpush.msra.mxu0 0.0
    %v170 = vand.u32 %v81, 4294901760
    %v171 = vsub.f32 %v81, %v170
    %172 = vmatpush.msra.mxu0 %v171
    %v173 = vand.u32 %v80, 4294901760
    %v174 = vsub.f32 %v80, %v173
    %175 = vmatpush.msra.mxu0 %v174
    %v176 = vand.u32 %v79, 4294901760
    %v177 = vsub.f32 %v79, %v176
    %178 = vmatpush.msra.mxu0 %v177
    %v179 = vand.u32 %v78, 4294901760
    %v180 = vsub.f32 %v78, %v179
    %181 = vmatpush.msra.mxu0 %v180
    %v182 = vand.u32 %v86, 4294901760
    %v183 = vsub.f32 %v86, %v182
    %184 = vmatmul.f32.gmra.mxu0 %v183
    %v185 = vpop.f32.mrf.mxu0
    %v186 = vadd.f32 %v156, %v185
    %187 = vdwg.mxu0
    %188 = vmatpush.msra.mxu0 0.0
    %189 = vmatpush.msra.mxu0 0.0
    %190 = vmatpush.msra.mxu0 0.0
    %191 = vmatpush.msra.mxu0 0.0
    %192 = vmatpush.msra.mxu0 0.0
    %193 = vmatpush.msra.mxu0 0.0
    %194 = vmatpush.msra.mxu0 0.0
    %195 = vmatpush.msra.mxu0 0.0
    %196 = vmatpush.msra.mxu0 0.0
    %197 = vmatpush.msra.mxu0 0.0
    %198 = vmatpush.msra.mxu0 0.0
    %199 = vmatpush.msra.mxu0 0.0
    %v200 = vand.u32 %v81, 4294901760
    %201 = vmatpush.msra.mxu0 %v200
    %v202 = vand.u32 %v80, 4294901760
    %203 = vmatpush.msra.mxu0 %v202
    %v204 = vand.u32 %v79, 4294901760
    %205 = vmatpush.msra.mxu0 %v204
    %v206 = vand.u32 %v78, 4294901760
    %207 = vmatpush.msra.mxu0 %v206
    %v208 = vand.u32 %v86, 4294901760
    %v209 = vsub.f32 %v86, %v208
    %v210 = vand.u32 %v209, 4294901760
    %211 = vmatmul.f32.gmra.mxu0 %v210
    %v212 = vpop.f32.mrf.mxu0
    %v213 = vadd.f32 %v186, %v212
    %214 = vdwg.mxu0
    %215 = vmatpush.msra.mxu0 0.0
    %216 = vmatpush.msra.mxu0 0.0
    %217 = vmatpush.msra.mxu0 0.0
    %218 = vmatpush.msra.mxu0 0.0
    %219 = vmatpush.msra.mxu0 0.0
    %220 = vmatpush.msra.mxu0 0.0
    %221 = vmatpush.msra.mxu0 0.0
    %222 = vmatpush.msra.mxu0 0.0
    %223 = vmatpush.msra.mxu0 0.0
    %224 = vmatpush.msra.mxu0 0.0
    %225 = vmatpush.msra.mxu0 0.0
    %226 = vmatpush.msra.mxu0 0.0
    %v227 = vand.u32 %v81, 4294901760
    %v228 = vsub.f32 %v81, %v227
    %v229 = vand.u32 %v228, 4294901760
    %230 = vmatpush.msra.mxu0 %v229
    %v231 = vand.u32 %v80, 4294901760
    %v232 = vsub.f32 %v80, %v231
    %v233 = vand.u32 %v232, 4294901760
    %234 = vmatpush.msra.mxu0 %v233
    %v235 = vand.u32 %v79, 4294901760
    %v236 = vsub.f32 %v79, %v235
    %v237 = vand.u32 %v236, 4294901760
    %238 = vmatpush.msra.mxu0 %v237
    %v239 = vand.u32 %v78, 4294901760
    %v240 = vsub.f32 %v78, %v239
    %v241 = vand.u32 %v240, 4294901760
    %242 = vmatpush.msra.mxu0 %v241
    %v243 = vand.u32 %v86, 4294901760
    %244 = vmatmul.f32.gmra.mxu0 %v243
    %v245 = vpop.f32.mrf.mxu0
    %v246 = vadd.f32 %v213, %v245
    %247 = vdwg.mxu0
    %248 = vmatpush.msra.mxu0 0.0
    %249 = vmatpush.msra.mxu0 0.0
    %250 = vmatpush.msra.mxu0 0.0
    %251 = vmatpush.msra.mxu0 0.0
    %252 = vmatpush.msra.mxu0 0.0
    %253 = vmatpush.msra.mxu0 0.0
    %254 = vmatpush.msra.mxu0 0.0
    %255 = vmatpush.msra.mxu0 0.0
    %256 = vmatpush.msra.mxu0 0.0
    %257 = vmatpush.msra.mxu0 0.0
    %258 = vmatpush.msra.mxu0 0.0
    %259 = vmatpush.msra.mxu0 0.0
    %v260 = vand.u32 %v81, 4294901760
    %261 = vmatpush.msra.mxu0 %v260
    %v262 = vand.u32 %v80, 4294901760
    %263 = vmatpush.msra.mxu0 %v262
    %v264 = vand.u32 %v79, 4294901760
    %265 = vmatpush.msra.mxu0 %v264
    %v266 = vand.u32 %v78, 4294901760
    %267 = vmatpush.msra.mxu0 %v266
    %v268 = vand.u32 %v86, 4294901760
    %269 = vmatmul.f32.gmra.mxu0 %v268
    %v270 = vpop.f32.mrf.mxu0
    %v271 = vadd.f32 %v246, %v270
    %272 = vdwg.mxu0
    %v273 = vadd.f32 %v271, %v74
    %vm274 = vcmask 57344
    %v275 = vsel %vm274, %v273, -inf
    %276 = vmax.xlane.f32.xlu0 %v275
    %v277 = vpop.xlane.xlu0 %276
    %v278 = vsub.f32 %v273, %v277
    %v279 = vmul.f32 %v278, 1.442695
    %v280 = vpow.pop %v279
    %v281 = vsel %vm274, %v280, 0.0
    %282 = vadd.xlane.f32.xlu0 %v281
    %v283 = vpop.xlane.xlu0 %282
    %v284 = vrcp.pop %v283
    %v285 = vmul.f32 %v283, %v284
    %v286 = vsub.f32 2.0, %v285
    %v287 = vmul.f32 %v284, %v286
    %v288 = vmul.f32 %v280, %v287
    %289 = vst.msk [vmem:[#allocation10] sm:$0x1] %vm274, %v288
    %v290 = vld [vmem:[#allocation3] sm:$0xff]
    %vm291 = vcmask 64512
    %v293 = vsel %vm291, %v288, 0
    %295 = vmatpush.msra.mxu0 0.0
    %296 = vmatpush.msra.mxu0 0.0
    %297 = vmatpush.msra.mxu0 0.0
    %298 = vmatpush.msra.mxu0 0.0
    %299 = vmatpush.msra.mxu0 0.0
    %300 = vmatpush.msra.mxu0 0.0
    %301 = vmatpush.msra.mxu0 0.0
    %302 = vmatpush.msra.mxu0 0.0
    %303 = vmatpush.msra.mxu0 0.0
    %304 = vmatpush.msra.mxu0 0.0
    %305 = vmatpush.msra.mxu0 0.0
    %306 = vmatpush.msra.mxu0 0.0
    %307 = vmatpush.msra.mxu0 0.0
    %308 = vmatpush.msra.mxu0 0.0
    %309 = vmatpush.msra.mxu0 0.0
    %v310 = vand.u32 %v290, 4294901760
    %311 = vmatpush.msra.mxu0 %v310
    %v312 = vand.u32 %v293, 4294901760
    %v313 = vsub.f32 %v293, %v312
    %v314 = vand.u32 %v313, 4294901760
    %v315 = vsub.f32 %v313, %v314
    %v316 = vand.u32 %v315, 4294901760
    %317 = vmatmul.f32.gmra.mxu0 %v316
    %v318 = vpop.f32.mrf.mxu0
    %v319 = vadd.f32 0.0, %v318
    %320 = vdwg.mxu0
    %321 = vmatpush.msra.mxu0 0.0
    %322 = vmatpush.msra.mxu0 0.0
    %323 = vmatpush.msra.mxu0 0.0
    %324 = vmatpush.msra.mxu0 0.0
    %325 = vmatpush.msra.mxu0 0.0
    %326 = vmatpush.msra.mxu0 0.0
    %327 = vmatpush.msra.mxu0 0.0
    %328 = vmatpush.msra.mxu0 0.0
    %329 = vmatpush.msra.mxu0 0.0
    %330 = vmatpush.msra.mxu0 0.0
    %331 = vmatpush.msra.mxu0 0.0
    %332 = vmatpush.msra.mxu0 0.0
    %333 = vmatpush.msra.mxu0 0.0
    %334 = vmatpush.msra.mxu0 0.0
    %335 = vmatpush.msra.mxu0 0.0
    %v336 = vand.u32 %v290, 4294901760
    %v337 = vsub.f32 %v290, %v336
    %v338 = vand.u32 %v337, 4294901760
    %v339 = vsub.f32 %v337, %v338
    %v340 = vand.u32 %v339, 4294901760
    %341 = vmatpush.msra.mxu0 %v340
    %v342 = vand.u32 %v293, 4294901760
    %343 = vmatmul.f32.gmra.mxu0 %v342
    %v344 = vpop.f32.mrf.mxu0
    %v345 = vadd.f32 %v319, %v344
    %346 = vdwg.mxu0
    %347 = vmatpush.msra.mxu0 0.0
    %348 = vmatpush.msra.mxu0 0.0
    %349 = vmatpush.msra.mxu0 0.0
    %350 = vmatpush.msra.mxu0 0.0
    %351 = vmatpush.msra.mxu0 0.0
    %352 = vmatpush.msra.mxu0 0.0
    %353 = vmatpush.msra.mxu0 0.0
    %354 = vmatpush.msra.mxu0 0.0
    %355 = vmatpush.msra.mxu0 0.0
    %356 = vmatpush.msra.mxu0 0.0
    %357 = vmatpush.msra.mxu0 0.0
    %358 = vmatpush.msra.mxu0 0.0
    %359 = vmatpush.msra.mxu0 0.0
    %360 = vmatpush.msra.mxu0 0.0
    %361 = vmatpush.msra.mxu0 0.0
    %v362 = vand.u32 %v290, 4294901760
    %v363 = vsub.f32 %v290, %v362
    %364 = vmatpush.msra.mxu0 %v363
    %v365 = vand.u32 %v293, 4294901760
    %v366 = vsub.f32 %v293, %v365
    %367 = vmatmul.f32.gmra.mxu0 %v366
    %v368 = vpop.f32.mrf.mxu0
    %v369 = vadd.f32 %v345, %v368
    %370 = vdwg.mxu0
    %371 = vmatpush.msra.mxu0 0.0
    %372 = vmatpush.msra.mxu0 0.0
    %373 = vmatpush.msra.mxu0 0.0
    %374 = vmatpush.msra.mxu0 0.0
    %375 = vmatpush.msra.mxu0 0.0
    %376 = vmatpush.msra.mxu0 0.0
    %377 = vmatpush.msra.mxu0 0.0
    %378 = vmatpush.msra.mxu0 0.0
    %379 = vmatpush.msra.mxu0 0.0
    %380 = vmatpush.msra.mxu0 0.0
    %381 = vmatpush.msra.mxu0 0.0
    %382 = vmatpush.msra.mxu0 0.0
    %383 = vmatpush.msra.mxu0 0.0
    %384 = vmatpush.msra.mxu0 0.0
    %385 = vmatpush.msra.mxu0 0.0
    %v386 = vand.u32 %v290, 4294901760
    %387 = vmatpush.msra.mxu0 %v386
    %v388 = vand.u32 %v293, 4294901760
    %v389 = vsub.f32 %v293, %v388
    %v390 = vand.u32 %v389, 4294901760
    %391 = vmatmul.f32.gmra.mxu0 %v390
    %v392 = vpop.f32.mrf.mxu0
    %v393 = vadd.f32 %v369, %v392
    %394 = vdwg.mxu0
    %395 = vmatpush.msra.mxu0 0.0
    %396 = vmatpush.msra.mxu0 0.0
    %397 = vmatpush.msra.mxu0 0.0
    %398 = vmatpush.msra.mxu0 0.0
    %399 = vmatpush.msra.mxu0 0.0
    %400 = vmatpush.msra.mxu0 0.0
    %401 = vmatpush.msra.mxu0 0.0
    %402 = vmatpush.msra.mxu0 0.0
    %403 = vmatpush.msra.mxu0 0.0
    %404 = vmatpush.msra.mxu0 0.0
    %405 = vmatpush.msra.mxu0 0.0
    %406 = vmatpush.msra.mxu0 0.0
    %407 = vmatpush.msra.mxu0 0.0
    %408 = vmatpush.msra.mxu0 0.0
    %409 = vmatpush.msra.mxu0 0.0
    %v410 = vand.u32 %v290, 4294901760
    %v411 = vsub.f32 %v290, %v410
    %v412 = vand.u32 %v411, 4294901760
    %413 = vmatpush.msra.mxu0 %v412
    %v414 = vand.u32 %v293, 4294901760
    %415 = vmatmul.f32.gmra.mxu0 %v414
    %v416 = vpop.f32.mrf.mxu0
    %v417 = vadd.f32 %v393, %v416
    %418 = vdwg.mxu0
    %419 = vmatpush.msra.mxu0 0.0
    %420 = vmatpush.msra.mxu0 0.0
    %421 = vmatpush.msra.mxu0 0.0
    %422 = vmatpush.msra.mxu0 0.0
    %423 = vmatpush.msra.mxu0 0.0
    %424 = vmatpush.msra.mxu0 0.0
    %425 = vmatpush.msra.mxu0 0.0
    %426 = vmatpush.msra.mxu0 0.0
    %427 = vmatpush.msra.mxu0 0.0
    %428 = vmatpush.msra.mxu0 0.0
    %429 = vmatpush.msra.mxu0 0.0
    %430 = vmatpush.msra.mxu0 0.0
    %431 = vmatpush.msra.mxu0 0.0
    %432 = vmatpush.msra.mxu0 0.0
    %433 = vmatpush.msra.mxu0 0.0
    %v434 = vand.u32 %v290, 4294901760
    %435 = vmatpush.msra.mxu0 %v434
    %v436 = vand.u32 %v293, 4294901760
    %437 = vmatmul.f32.gmra.mxu0 %v436
    %v438 = vpop.f32.mrf.mxu0
    %v439 = vadd.f32 %v417, %v438
    %440 = vdwg.mxu0
    %s441 = scalar_lea.vmem [#allocation6], 32
    %v442 = vld [vmem:[%s441] sm:$0xff]
    %v443 = vld [vmem:[%s441 + $0x8] sm:$0xff]
    %v444 = vld [vmem:[%s441 + $0x10] sm:$0xff]
    %v445 = vld [vmem:[%s441 + $0x18] sm:$0xff]
    %v446 = vmul.f32 %v82, %v75
    %v448 = vsel %vm84, %v439, 0
    %450 = vmatpush.msra.mxu0 0.0
    %451 = vmatpush.msra.mxu0 0.0
    %452 = vmatpush.msra.mxu0 0.0
    %453 = vmatpush.msra.mxu0 0.0
    %454 = vmatpush.msra.mxu0 0.0
    %455 = vmatpush.msra.mxu0 0.0
    %456 = vmatpush.msra.mxu0 0.0
    %457 = vmatpush.msra.mxu0 0.0
    %458 = vmatpush.msra.mxu0 0.0
    %459 = vmatpush.msra.mxu0 0.0
    %460 = vmatpush.msra.mxu0 0.0
    %461 = vmatpush.msra.mxu0 0.0
    %v462 = vand.u32 %v445, 4294901760
    %463 = vmatpush.msra.mxu0 %v462
    %v464 = vand.u32 %v444, 4294901760
    %465 = vmatpush.msra.mxu0 %v464
    %v466 = vand.u32 %v443, 4294901760
    %467 = vmatpush.msra.mxu0 %v466
    %v468 = vand.u32 %v442, 4294901760
    %469 = vmatpush.msra.mxu0 %v468
    %v470 = vand.u32 %v448, 4294901760
    %v471 = vsub.f32 %v448, %v470
    %v472 = vand.u32 %v471, 4294901760
    %v473 = vsub.f32 %v471, %v472
    %v474 = vand.u32 %v473, 4294901760
    %475 = vmatmul.f32.gmra.mxu0 %v474
    %v476 = vpop.f32.mrf.mxu0
    %v477 = vadd.f32 %v446, %v476
    %478 = vdwg.mxu0
    %479 = vmatpush.msra.mxu0 0.0
    %480 = vmatpush.msra.mxu0 0.0
    %481 = vmatpush.msra.mxu0 0.0
    %482 = vmatpush.msra.mxu0 0.0
    %483 = vmatpush.msra.mxu0 0.0
    %484 = vmatpush.msra.mxu0 0.0
    %485 = vmatpush.msra.mxu0 0.0
    %486 = vmatpush.msra.mxu0 0.0
    %487 = vmatpush.msra.mxu0 0.0
    %488 = vmatpush.msra.mxu0 0.0
    %489 = vmatpush.msra.mxu0 0.0
    %490 = vmatpush.msra.mxu0 0.0
    %v491 = vand.u32 %v445, 4294901760
    %v492 = vsub.f32 %v445, %v491
    %v493 = vand.u32 %v492, 4294901760
    %v494 = vsub.f32 %v492, %v493
    %v495 = vand.u32 %v494, 4294901760
    %496 = vmatpush.msra.mxu0 %v495
    %v497 = vand.u32 %v444, 4294901760
    %v498 = vsub.f32 %v444, %v497
    %v499 = vand.u32 %v498, 4294901760
    %v500 = vsub.f32 %v498, %v499
    %v501 = vand.u32 %v500, 4294901760
    %502 = vmatpush.msra.mxu0 %v501
    %v503 = vand.u32 %v443, 4294901760
    %v504 = vsub.f32 %v443, %v503
    %v505 = vand.u32 %v504, 4294901760
    %v506 = vsub.f32 %v504, %v505
    %v507 = vand.u32 %v506, 4294901760
    %508 = vmatpush.msra.mxu0 %v507
    %v509 = vand.u32 %v442, 4294901760
    %v510 = vsub.f32 %v442, %v509
    %v511 = vand.u32 %v510, 4294901760
    %v512 = vsub.f32 %v510, %v511
    %v513 = vand.u32 %v512, 4294901760
    %514 = vmatpush.msra.mxu0 %v513
    %v515 = vand.u32 %v448, 4294901760
    %516 = vmatmul.f32.gmra.mxu0 %v515
    %v517 = vpop.f32.mrf.mxu0
    %v518 = vadd.f32 %v477, %v517
    %519 = vdwg.mxu0
    %520 = vmatpush.msra.mxu0 0.0
    %521 = vmatpush.msra.mxu0 0.0
    %522 = vmatpush.msra.mxu0 0.0
    %523 = vmatpush.msra.mxu0 0.0
    %524 = vmatpush.msra.mxu0 0.0
    %525 = vmatpush.msra.mxu0 0.0
    %526 = vmatpush.msra.mxu0 0.0
    %527 = vmatpush.msra.mxu0 0.0
    %528 = vmatpush.msra.mxu0 0.0
    %529 = vmatpush.msra.mxu0 0.0
    %530 = vmatpush.msra.mxu0 0.0
    %531 = vmatpush.msra.mxu0 0.0
    %v532 = vand.u32 %v445, 4294901760
    %v533 = vsub.f32 %v445, %v532
    %534 = vmatpush.msra.mxu0 %v533
    %v535 = vand.u32 %v444, 4294901760
    %v536 = vsub.f32 %v444, %v535
    %537 = vmatpush.msra.mxu0 %v536
    %v538 = vand.u32 %v443, 4294901760
    %v539 = vsub.f32 %v443, %v538
    %540 = vmatpush.msra.mxu0 %v539
    %v541 = vand.u32 %v442, 4294901760
    %v542 = vsub.f32 %v442, %v541
    %543 = vmatpush.msra.mxu0 %v542
    %v544 = vand.u32 %v448, 4294901760
    %v545 = vsub.f32 %v448, %v544
    %546 = vmatmul.f32.gmra.mxu0 %v545
    %v547 = vpop.f32.mrf.mxu0
    %v548 = vadd.f32 %v518, %v547
    %549 = vdwg.mxu0
    %550 = vmatpush.msra.mxu0 0.0
    %551 = vmatpush.msra.mxu0 0.0
    %552 = vmatpush.msra.mxu0 0.0
    %553 = vmatpush.msra.mxu0 0.0
    %554 = vmatpush.msra.mxu0 0.0
    %555 = vmatpush.msra.mxu0 0.0
    %556 = vmatpush.msra.mxu0 0.0
    %557 = vmatpush.msra.mxu0 0.0
    %558 = vmatpush.msra.mxu0 0.0
    %559 = vmatpush.msra.mxu0 0.0
    %560 = vmatpush.msra.mxu0 0.0
    %561 = vmatpush.msra.mxu0 0.0
    %v562 = vand.u32 %v445, 4294901760
    %563 = vmatpush.msra.mxu0 %v562
    %v564 = vand.u32 %v444, 4294901760
    %565 = vmatpush.msra.mxu0 %v564
    %v566 = vand.u32 %v443, 4294901760
    %567 = vmatpush.msra.mxu0 %v566
    %v568 = vand.u32 %v442, 4294901760
    %569 = vmatpush.msra.mxu0 %v568
    %v570 = vand.u32 %v448, 4294901760
    %v571 = vsub.f32 %v448, %v570
    %v572 = vand.u32 %v571, 4294901760
    %573 = vmatmul.f32.gmra.mxu0 %v572
    %v574 = vpop.f32.mrf.mxu0
    %v575 = vadd.f32 %v548, %v574
    %576 = vdwg.mxu0
    %577 = vmatpush.msra.mxu0 0.0
    %578 = vmatpush.msra.mxu0 0.0
    %579 = vmatpush.msra.mxu0 0.0
    %580 = vmatpush.msra.mxu0 0.0
    %581 = vmatpush.msra.mxu0 0.0
    %582 = vmatpush.msra.mxu0 0.0
    %583 = vmatpush.msra.mxu0 0.0
    %584 = vmatpush.msra.mxu0 0.0
    %585 = vmatpush.msra.mxu0 0.0
    %586 = vmatpush.msra.mxu0 0.0
    %587 = vmatpush.msra.mxu0 0.0
    %588 = vmatpush.msra.mxu0 0.0
    %v589 = vand.u32 %v445, 4294901760
    %v590 = vsub.f32 %v445, %v589
    %v591 = vand.u32 %v590, 4294901760
    %592 = vmatpush.msra.mxu0 %v591
    %v593 = vand.u32 %v444, 4294901760
    %v594 = vsub.f32 %v444, %v593
    %v595 = vand.u32 %v594, 4294901760
    %596 = vmatpush.msra.mxu0 %v595
    %v597 = vand.u32 %v443, 4294901760
    %v598 = vsub.f32 %v443, %v597
    %v599 = vand.u32 %v598, 4294901760
    %600 = vmatpush.msra.mxu0 %v599
    %v601 = vand.u32 %v442, 4294901760
    %v602 = vsub.f32 %v442, %v601
    %v603 = vand.u32 %v602, 4294901760
    %604 = vmatpush.msra.mxu0 %v603
    %v605 = vand.u32 %v448, 4294901760
    %606 = vmatmul.f32.gmra.mxu0 %v605
    %v607 = vpop.f32.mrf.mxu0
    %v608 = vadd.f32 %v575, %v607
    %609 = vdwg.mxu0
    %610 = vmatpush.msra.mxu0 0.0
    %611 = vmatpush.msra.mxu0 0.0
    %612 = vmatpush.msra.mxu0 0.0
    %613 = vmatpush.msra.mxu0 0.0
    %614 = vmatpush.msra.mxu0 0.0
    %615 = vmatpush.msra.mxu0 0.0
    %616 = vmatpush.msra.mxu0 0.0
    %617 = vmatpush.msra.mxu0 0.0
    %618 = vmatpush.msra.mxu0 0.0
    %619 = vmatpush.msra.mxu0 0.0
    %620 = vmatpush.msra.mxu0 0.0
    %621 = vmatpush.msra.mxu0 0.0
    %v622 = vand.u32 %v445, 4294901760
    %623 = vmatpush.msra.mxu0 %v622
    %v624 = vand.u32 %v444, 4294901760
    %625 = vmatpush.msra.mxu0 %v624
    %v626 = vand.u32 %v443, 4294901760
    %627 = vmatpush.msra.mxu0 %v626
    %v628 = vand.u32 %v442, 4294901760
    %629 = vmatpush.msra.mxu0 %v628
    %v630 = vand.u32 %v448, 4294901760
    %631 = vmatmul.f32.gmra.mxu0 %v630
    %v632 = vpop.f32.mrf.mxu0
    %v633 = vadd.f32 %v608, %v632
    %634 = vdwg.mxu0
    %v635 = vadd.f32 %v633, %v76
    %v636 = vmax.f32 %v635, 0.0
    %s637 = scalar_lea.vmem [#allocation6], 96
    %v638 = vld [vmem:[%s637] sm:$0xff]
    %v639 = vld [vmem:[%s637 + $0x8] sm:$0xff]
    %v640 = vld [vmem:[%s637 + $0x10] sm:$0xff]
    %v641 = vld [vmem:[%s637 + $0x18] sm:$0xff]
    %v642 = vld [vmem:[#allocation8 + $0x5] sm:$0x1]
    %v644 = vsel %vm84, %v636, 0
    %646 = vmatpush.msra.mxu0 0.0
    %647 = vmatpush.msra.mxu0 0.0
    %648 = vmatpush.msra.mxu0 0.0
    %649 = vmatpush.msra.mxu0 0.0
    %650 = vmatpush.msra.mxu0 0.0
    %651 = vmatpush.msra.mxu0 0.0
    %652 = vmatpush.msra.mxu0 0.0
    %653 = vmatpush.msra.mxu0 0.0
    %654 = vmatpush.msra.mxu0 0.0
    %655 = vmatpush.msra.mxu0 0.0
    %656 = vmatpush.msra.mxu0 0.0
    %657 = vmatpush.msra.mxu0 0.0
    %v658 = vand.u32 %v641, 4294901760
    %659 = vmatpush.msra.mxu0 %v658
    %v660 = vand.u32 %v640, 4294901760
    %661 = vmatpush.msra.mxu0 %v660
    %v662 = vand.u32 %v639, 4294901760
    %663 = vmatpush.msra.mxu0 %v662
    %v664 = vand.u32 %v638, 4294901760
    %665 = vmatpush.msra.mxu0 %v664
    %v666 = vand.u32 %v644, 4294901760
    %v667 = vsub.f32 %v644, %v666
    %v668 = vand.u32 %v667, 4294901760
    %v669 = vsub.f32 %v667, %v668
    %v670 = vand.u32 %v669, 4294901760
    %671 = vmatmul.f32.gmra.mxu0 %v670
    %v672 = vpop.f32.mrf.mxu0
    %v673 = vadd.f32 %v642, %v672
    %674 = vdwg.mxu0
    %675 = vmatpush.msra.mxu0 0.0
    %676 = vmatpush.msra.mxu0 0.0
    %677 = vmatpush.msra.mxu0 0.0
    %678 = vmatpush.msra.mxu0 0.0
    %679 = vmatpush.msra.mxu0 0.0
    %680 = vmatpush.msra.mxu0 0.0
    %681 = vmatpush.msra.mxu0 0.0
    %682 = vmatpush.msra.mxu0 0.0
    %683 = vmatpush.msra.mxu0 0.0
    %684 = vmatpush.msra.mxu0 0.0
    %685 = vmatpush.msra.mxu0 0.0
    %686 = vmatpush.msra.mxu0 0.0
    %v687 = vand.u32 %v641, 4294901760
    %v688 = vsub.f32 %v641, %v687
    %v689 = vand.u32 %v688, 4294901760
    %v690 = vsub.f32 %v688, %v689
    %v691 = vand.u32 %v690, 4294901760
    %692 = vmatpush.msra.mxu0 %v691
    %v693 = vand.u32 %v640, 4294901760
    %v694 = vsub.f32 %v640, %v693
    %v695 = vand.u32 %v694, 4294901760
    %v696 = vsub.f32 %v694, %v695
    %v697 = vand.u32 %v696, 4294901760
    %698 = vmatpush.msra.mxu0 %v697
    %v699 = vand.u32 %v639, 4294901760
    %v700 = vsub.f32 %v639, %v699
    %v701 = vand.u32 %v700, 4294901760
    %v702 = vsub.f32 %v700, %v701
    %v703 = vand.u32 %v702, 4294901760
    %704 = vmatpush.msra.mxu0 %v703
    %v705 = vand.u32 %v638, 4294901760
    %v706 = vsub.f32 %v638, %v705
    %v707 = vand.u32 %v706, 4294901760
    %v708 = vsub.f32 %v706, %v707
    %v709 = vand.u32 %v708, 4294901760
    %710 = vmatpush.msra.mxu0 %v709
    %v711 = vand.u32 %v644, 4294901760
    %712 = vmatmul.f32.gmra.mxu0 %v711
    %v713 = vpop.f32.mrf.mxu0
    %v714 = vadd.f32 %v673, %v713
    %715 = vdwg.mxu0
    %716 = vmatpush.msra.mxu0 0.0
    %717 = vmatpush.msra.mxu0 0.0
    %718 = vmatpush.msra.mxu0 0.0
    %719 = vmatpush.msra.mxu0 0.0
    %720 = vmatpush.msra.mxu0 0.0
    %721 = vmatpush.msra.mxu0 0.0
    %722 = vmatpush.msra.mxu0 0.0
    %723 = vmatpush.msra.mxu0 0.0
    %724 = vmatpush.msra.mxu0 0.0
    %725 = vmatpush.msra.mxu0 0.0
    %726 = vmatpush.msra.mxu0 0.0
    %727 = vmatpush.msra.mxu0 0.0
    %v728 = vand.u32 %v641, 4294901760
    %v729 = vsub.f32 %v641, %v728
    %730 = vmatpush.msra.mxu0 %v729
    %v731 = vand.u32 %v640, 4294901760
    %v732 = vsub.f32 %v640, %v731
    %733 = vmatpush.msra.mxu0 %v732
    %v734 = vand.u32 %v639, 4294901760
    %v735 = vsub.f32 %v639, %v734
    %736 = vmatpush.msra.mxu0 %v735
    %v737 = vand.u32 %v638, 4294901760
    %v738 = vsub.f32 %v638, %v737
    %739 = vmatpush.msra.mxu0 %v738
    %v740 = vand.u32 %v644, 4294901760
    %v741 = vsub.f32 %v644, %v740
    %742 = vmatmul.f32.gmra.mxu0 %v741
    %v743 = vpop.f32.mrf.mxu0
    %v744 = vadd.f32 %v714, %v743
    %745 = vdwg.mxu0
    %746 = vmatpush.msra.mxu0 0.0
    %747 = vmatpush.msra.mxu0 0.0
    %748 = vmatpush.msra.mxu0 0.0
    %749 = vmatpush.msra.mxu0 0.0
    %750 = vmatpush.msra.mxu0 0.0
    %751 = vmatpush.msra.mxu0 0.0
    %752 = vmatpush.msra.mxu0 0.0
    %753 = vmatpush.msra.mxu0 0.0
    %754 = vmatpush.msra.mxu0 0.0
    %755 = vmatpush.msra.mxu0 0.0
    %756 = vmatpush.msra.mxu0 0.0
    %757 = vmatpush.msra.mxu0 0.0
    %v758 = vand.u32 %v641, 4294901760
    %759 = vmatpush.msra.mxu0 %v758
    %v760 = vand.u32 %v640, 4294901760
    %761 = vmatpush.msra.mxu0 %v760
    %v762 = vand.u32 %v639, 4294901760
    %763 = vmatpush.msra.mxu0 %v762
    %v764 = vand.u32 %v638, 4294901760
    %765 = vmatpush.msra.mxu0 %v764
    %v766 = vand.u32 %v644, 4294901760
    %v767 = vsub.f32 %v644, %v766
    %v768 = vand.u32 %v767, 4294901760
    %769 = vmatmul.f32.gmra.mxu0 %v768
    %v770 = vpop.f32.mrf.mxu0
    %v771 = vadd.f32 %v744, %v770
    %772 = vdwg.mxu0
    %773 = vmatpush.msra.mxu0 0.0
    %774 = vmatpush.msra.mxu0 0.0
    %775 = vmatpush.msra.mxu0 0.0
    %776 = vmatpush.msra.mxu0 0.0
    %777 = vmatpush.msra.mxu0 0.0
    %778 = vmatpush.msra.mxu0 0.0
    %779 = vmatpush.msra.mxu0 0.0
    %780 = vmatpush.msra.mxu0 0.0
    %781 = vmatpush.msra.mxu0 0.0
    %782 = vmatpush.msra.mxu0 0.0
    %783 = vmatpush.msra.mxu0 0.0
    %784 = vmatpush.msra.mxu0 0.0
    %v785 = vand.u32 %v641, 4294901760
    %v786 = vsub.f32 %v641, %v785
    %v787 = vand.u32 %v786, 4294901760
    %788 = vmatpush.msra.mxu0 %v787
    %v789 = vand.u32 %v640, 4294901760
    %v790 = vsub.f32 %v640, %v789
    %v791 = vand.u32 %v790, 4294901760
    %792 = vmatpush.msra.mxu0 %v791
    %v793 = vand.u32 %v639, 4294901760
    %v794 = vsub.f32 %v639, %v793
    %v795 = vand.u32 %v794, 4294901760
    %796 = vmatpush.msra.mxu0 %v795
    %v797 = vand.u32 %v638, 4294901760
    %v798 = vsub.f32 %v638, %v797
    %v799 = vand.u32 %v798, 4294901760
    %800 = vmatpush.msra.mxu0 %v799
    %v801 = vand.u32 %v644, 4294901760
    %802 = vmatmul.f32.gmra.mxu0 %v801
    %v803 = vpop.f32.mrf.mxu0
    %v804 = vadd.f32 %v771, %v803
    %805 = vdwg.mxu0
    %806 = vmatpush.msra.mxu0 0.0
    %807 = vmatpush.msra.mxu0 0.0
    %808 = vmatpush.msra.mxu0 0.0
    %809 = vmatpush.msra.mxu0 0.0
    %810 = vmatpush.msra.mxu0 0.0
    %811 = vmatpush.msra.mxu0 0.0
    %812 = vmatpush.msra.mxu0 0.0
    %813 = vmatpush.msra.mxu0 0.0
    %814 = vmatpush.msra.mxu0 0.0
    %815 = vmatpush.msra.mxu0 0.0
    %816 = vmatpush.msra.mxu0 0.0
    %817 = vmatpush.msra.mxu0 0.0
    %v818 = vand.u32 %v641, 4294901760
    %819 = vmatpush.msra.mxu0 %v818
    %v820 = vand.u32 %v640, 4294901760
    %821 = vmatpush.msra.mxu0 %v820
    %v822 = vand.u32 %v639, 4294901760
    %823 = vmatpush.msra.mxu0 %v822
    %v824 = vand.u32 %v638, 4294901760
    %825 = vmatpush.msra.mxu0 %v824
    %v826 = vand.u32 %v644, 4294901760
    %827 = vmatmul.f32.gmra.mxu0 %v826
    %v828 = vpop.f32.mrf.mxu0
    %v829 = vadd.f32 %v804, %v828
    %830 = vdwg.mxu0
    %s831 = scalar_lea.vmem [#allocation6], 128
    %v832 = vld [vmem:[%s831] sm:$0xff]
    %v833 = vld [vmem:[%s831 + $0x8] sm:$0xff]
    %v834 = vld [vmem:[%s831 + $0x10] sm:$0xff]
    %v835 = vld [vmem:[%s831 + $0x18] sm:$0xff]
    %v836 = vld [vmem:[#allocation8 + $0x7] sm:$0x1]
    %837 = vmatpush.msra.mxu0 0.0
    %838 = vmatpush.msra.mxu0 0.0
    %839 = vmatpush.msra.mxu0 0.0
    %840 = vmatpush.msra.mxu0 0.0
    %841 = vmatpush.msra.mxu0 0.0
    %842 = vmatpush.msra.mxu0 0.0
    %843 = vmatpush.msra.mxu0 0.0
    %844 = vmatpush.msra.mxu0 0.0
    %845 = vmatpush.msra.mxu0 0.0
    %846 = vmatpush.msra.mxu0 0.0
    %847 = vmatpush.msra.mxu0 0.0
    %848 = vmatpush.msra.mxu0 0.0
    %v849 = vand.u32 %v835, 4294901760
    %850 = vmatpush.msra.mxu0 %v849
    %v851 = vand.u32 %v834, 4294901760
    %852 = vmatpush.msra.mxu0 %v851
    %v853 = vand.u32 %v833, 4294901760
    %854 = vmatpush.msra.mxu0 %v853
    %v855 = vand.u32 %v832, 4294901760
    %856 = vmatpush.msra.mxu0 %v855
    %v857 = vand.u32 %v86, 4294901760
    %v858 = vsub.f32 %v86, %v857
    %v859 = vand.u32 %v858, 4294901760
    %v860 = vsub.f32 %v858, %v859
    %v861 = vand.u32 %v860, 4294901760
    %862 = vmatmul.f32.gmra.mxu0 %v861
    %v863 = vpop.f32.mrf.mxu0
    %v864 = vadd.f32 %v836, %v863
    %865 = vdwg.mxu0
    %866 = vmatpush.msra.mxu0 0.0
    %867 = vmatpush.msra.mxu0 0.0
    %868 = vmatpush.msra.mxu0 0.0
    %869 = vmatpush.msra.mxu0 0.0
    %870 = vmatpush.msra.mxu0 0.0
    %871 = vmatpush.msra.mxu0 0.0
    %872 = vmatpush.msra.mxu0 0.0
    %873 = vmatpush.msra.mxu0 0.0
    %874 = vmatpush.msra.mxu0 0.0
    %875 = vmatpush.msra.mxu0 0.0
    %876 = vmatpush.msra.mxu0 0.0
    %877 = vmatpush.msra.mxu0 0.0
    %v878 = vand.u32 %v835, 4294901760
    %v879 = vsub.f32 %v835, %v878
    %v880 = vand.u32 %v879, 4294901760
    %v881 = vsub.f32 %v879, %v880
    %v882 = vand.u32 %v881, 4294901760
    %883 = vmatpush.msra.mxu0 %v882
    %v884 = vand.u32 %v834, 4294901760
    %v885 = vsub.f32 %v834, %v884
    %v886 = vand.u32 %v885, 4294901760
    %v887 = vsub.f32 %v885, %v886
    %v888 = vand.u32 %v887, 4294901760
    %889 = vmatpush.msra.mxu0 %v888
    %v890 = vand.u32 %v833, 4294901760
    %v891 = vsub.f32 %v833, %v890
    %v892 = vand.u32 %v891, 4294901760
    %v893 = vsub.f32 %v891, %v892
    %v894 = vand.u32 %v893, 4294901760
    %895 = vmatpush.msra.mxu0 %v894
    %v896 = vand.u32 %v832, 4294901760
    %v897 = vsub.f32 %v832, %v896
    %v898 = vand.u32 %v897, 4294901760
    %v899 = vsub.f32 %v897, %v898
    %v900 = vand.u32 %v899, 4294901760
    %901 = vmatpush.msra.mxu0 %v900
    %v902 = vand.u32 %v86, 4294901760
    %903 = vmatmul.f32.gmra.mxu0 %v902
    %v904 = vpop.f32.mrf.mxu0
    %v905 = vadd.f32 %v864, %v904
    %906 = vdwg.mxu0
    %907 = vmatpush.msra.mxu0 0.0
    %908 = vmatpush.msra.mxu0 0.0
    %909 = vmatpush.msra.mxu0 0.0
    %910 = vmatpush.msra.mxu0 0.0
    %911 = vmatpush.msra.mxu0 0.0
    %912 = vmatpush.msra.mxu0 0.0
    %913 = vmatpush.msra.mxu0 0.0
    %914 = vmatpush.msra.mxu0 0.0
    %915 = vmatpush.msra.mxu0 0.0
    %916 = vmatpush.msra.mxu0 0.0
    %917 = vmatpush.msra.mxu0 0.0
    %918 = vmatpush.msra.mxu0 0.0
    %v919 = vand.u32 %v835, 4294901760
    %v920 = vsub.f32 %v835, %v919
    %921 = vmatpush.msra.mxu0 %v920
    %v922 = vand.u32 %v834, 4294901760
    %v923 = vsub.f32 %v834, %v922
    %924 = vmatpush.msra.mxu0 %v923
    %v925 = vand.u32 %v833, 4294901760
    %v926 = vsub.f32 %v833, %v925
    %927 = vmatpush.msra.mxu0 %v926
    %v928 = vand.u32 %v832, 4294901760
    %v929 = vsub.f32 %v832, %v928
    %930 = vmatpush.msra.mxu0 %v929
    %v931 = vand.u32 %v86, 4294901760
    %v932 = vsub.f32 %v86, %v931
    %933 = vmatmul.f32.gmra.mxu0 %v932
    %v934 = vpop.f32.mrf.mxu0
    %v935 = vadd.f32 %v905, %v934
    %936 = vdwg.mxu0
    %937 = vmatpush.msra.mxu0 0.0
    %938 = vmatpush.msra.mxu0 0.0
    %939 = vmatpush.msra.mxu0 0.0
    %940 = vmatpush.msra.mxu0 0.0
    %941 = vmatpush.msra.mxu0 0.0
    %942 = vmatpush.msra.mxu0 0.0
    %943 = vmatpush.msra.mxu0 0.0
    %944 = vmatpush.msra.mxu0 0.0
    %945 = vmatpush.msra.mxu0 0.0
    %946 = vmatpush.msra.mxu0 0.0
    %947 = vmatpush.msra.mxu0 0.0
    %948 = vmatpush.msra.mxu0 0.0
    %v949 = vand.u32 %v835, 4294901760
    %950 = vmatpush.msra.mxu0 %v949
    %v951 = vand.u32 %v834, 4294901760
    %952 = vmatpush.msra.mxu0 %v951
    %v953 = vand.u32 %v833, 4294901760
    %954 = vmatpush.msra.mxu0 %v953
    %v955 = vand.u32 %v832, 4294901760
    %956 = vmatpush.msra.mxu0 %v955
    %v957 = vand.u32 %v86, 4294901760
    %v958 = vsub.f32 %v86, %v957
    %v959 = vand.u32 %v958, 4294901760
    %960 = vmatmul.f32.gmra.mxu0 %v959
    %v961 = vpop.f32.mrf.mxu0
    %v962 = vadd.f32 %v935, %v961
    %963 = vdwg.mxu0
    %964 = vmatpush.msra.mxu0 0.0
    %965 = vmatpush.msra.mxu0 0.0
    %966 = vmatpush.msra.mxu0 0.0
    %967 = vmatpush.msra.mxu0 0.0
    %968 = vmatpush.msra.mxu0 0.0
    %969 = vmatpush.msra.mxu0 0.0
    %970 = vmatpush.msra.mxu0 0.0
    %971 = vmatpush.msra.mxu0 0.0
    %972 = vmatpush.msra.mxu0 0.0
    %973 = vmatpush.msra.mxu0 0.0
    %974 = vmatpush.msra.mxu0 0.0
    %975 = vmatpush.msra.mxu0 0.0
    %v976 = vand.u32 %v835, 4294901760
    %v977 = vsub.f32 %v835, %v976
    %v978 = vand.u32 %v977, 4294901760
    %979 = vmatpush.msra.mxu0 %v978
    %v980 = vand.u32 %v834, 4294901760
    %v981 = vsub.f32 %v834, %v980
    %v982 = vand.u32 %v981, 4294901760
    %983 = vmatpush.msra.mxu0 %v982
    %v984 = vand.u32 %v833, 4294901760
    %v985 = vsub.f32 %v833, %v984
    %v986 = vand.u32 %v985, 4294901760
    %987 = vmatpush.msra.mxu0 %v986
    %v988 = vand.u32 %v832, 4294901760
    %v989 = vsub.f32 %v832, %v988
    %v990 = vand.u32 %v989, 4294901760
    %991 = vmatpush.msra.mxu0 %v990
    %v992 = vand.u32 %v86, 4294901760
    %993 = vmatmul.f32.gmra.mxu0 %v992
    %v994 = vpop.f32.mrf.mxu0
    %v995 = vadd.f32 %v962, %v994
    %996 = vdwg.mxu0
    %997 = vmatpush.msra.mxu0 0.0
    %998 = vmatpush.msra.mxu0 0.0
    %999 = vmatpush.msra.mxu0 0.0
    %1000 = vmatpush.msra.mxu0 0.0
    %1001 = vmatpush.msra.mxu0 0.0
    %1002 = vmatpush.msra.mxu0 0.0
    %1003 = vmatpush.msra.mxu0 0.0
    %1004 = vmatpush.msra.mxu0 0.0
    %1005 = vmatpush.msra.mxu0 0.0
    %1006 = vmatpush.msra.mxu0 0.0
    %1007 = vmatpush.msra.mxu0 0.0
    %1008 = vmatpush.msra.mxu0 0.0
    %v1009 = vand.u32 %v835, 4294901760
    %1010 = vmatpush.msra.mxu0 %v1009
    %v1011 = vand.u32 %v834, 4294901760
    %1012 = vmatpush.msra.mxu0 %v1011
    %v1013 = vand.u32 %v833, 4294901760
    %1014 = vmatpush.msra.mxu0 %v1013
    %v1015 = vand.u32 %v832, 4294901760
    %1016 = vmatpush.msra.mxu0 %v1015
    %v1017 = vand.u32 %v86, 4294901760
    %1018 = vmatmul.f32.gmra.mxu0 %v1017
    %v1019 = vpop.f32.mrf.mxu0
    %v1020 = vadd.f32 %v995, %v1019
    %1021 = vdwg.mxu0
    %v1022 = vadd.f32 %v829, %v1020
    %v1023 = vmul.f32 %v1022, 0.5
    %v1024 = vtanh.pop %v1023
    %v1025 = vadd.f32 %v1024, 1.0
    %v1026 = vmul.f32 %v1025, 0.5
    %1028 = vrot.lane.b32.xlu0 %v1020, 64
    %v1029 = vpop.permute.xlu0 %1028
    %v1031 = vmul.f32 %v1026, %v1029
    %1033 = vrot.lane.b32.xlu0 %v1031, 64
    %v1034 = vpop.permute.xlu0 %1033
    %v1036 = vadd.f32 %v829, %v1034
    %v1037 = vtanh.pop %v1036
    %v1038 = vsub.f32 1.0, %v1026
    %1040 = vrot.lane.b32.xlu0 %v1037, 96
    %v1041 = vpop.permute.xlu0 %1040
    %v1043 = vmul.f32 %v1038, %v1041
    %1044 = vrot.lane.b32.xlu0 %v72, 32
    %v1045 = vpop.permute.xlu0 %1044
    %v1047 = vmul.f32 %v1026, %v1045
    %v1048 = vadd.f32 %v1043, %v1047
    %s1049 = scalar_lea.vmem [#allocation6], 160
    %v1050 = vld [vmem:[%s1049] sm:$0xff]
    %v1051 = vld [vmem:[%s1049 + $0x8] sm:$0xff]
    %v1052 = vld [vmem:[%s1049 + $0x10] sm:$0xff]
    %v1053 = vld [vmem:[%s1049 + $0x18] sm:$0xff]
    %v1054 = vld [vmem:[#allocation8 + $0x6] sm:$0x1]
    %1056 = vrot.lane.b32.xlu0 %v1048, 96
    %v1057 = vpop.permute.xlu0 %1056
    %v1058 = vsel %vm84, %v1057, 0
    %1060 = vmatpush.msra.mxu0 0.0
    %1061 = vmatpush.msra.mxu0 0.0
    %1062 = vmatpush.msra.mxu0 0.0
    %1063 = vmatpush.msra.mxu0 0.0
    %1064 = vmatpush.msra.mxu0 0.0
    %1065 = vmatpush.msra.mxu0 0.0
    %1066 = vmatpush.msra.mxu0 0.0
    %1067 = vmatpush.msra.mxu0 0.0
    %1068 = vmatpush.msra.mxu0 0.0
    %1069 = vmatpush.msra.mxu0 0.0
    %1070 = vmatpush.msra.mxu0 0.0
    %1071 = vmatpush.msra.mxu0 0.0
    %v1072 = vand.u32 %v1053, 4294901760
    %1073 = vmatpush.msra.mxu0 %v1072
    %v1074 = vand.u32 %v1052, 4294901760
    %1075 = vmatpush.msra.mxu0 %v1074
    %v1076 = vand.u32 %v1051, 4294901760
    %1077 = vmatpush.msra.mxu0 %v1076
    %v1078 = vand.u32 %v1050, 4294901760
    %1079 = vmatpush.msra.mxu0 %v1078
    %v1080 = vand.u32 %v1058, 4294901760
    %v1081 = vsub.f32 %v1058, %v1080
    %v1082 = vand.u32 %v1081, 4294901760
    %v1083 = vsub.f32 %v1081, %v1082
    %v1084 = vand.u32 %v1083, 4294901760
    %1085 = vmatmul.f32.gmra.mxu0 %v1084
    %v1086 = vpop.f32.mrf.mxu0
    %v1087 = vadd.f32 %v1054, %v1086
    %1088 = vdwg.mxu0
    %1089 = vmatpush.msra.mxu0 0.0
    %1090 = vmatpush.msra.mxu0 0.0
    %1091 = vmatpush.msra.mxu0 0.0
    %1092 = vmatpush.msra.mxu0 0.0
    %1093 = vmatpush.msra.mxu0 0.0
    %1094 = vmatpush.msra.mxu0 0.0
    %1095 = vmatpush.msra.mxu0 0.0
    %1096 = vmatpush.msra.mxu0 0.0
    %1097 = vmatpush.msra.mxu0 0.0
    %1098 = vmatpush.msra.mxu0 0.0
    %1099 = vmatpush.msra.mxu0 0.0
    %1100 = vmatpush.msra.mxu0 0.0
    %v1101 = vand.u32 %v1053, 4294901760
    %v1102 = vsub.f32 %v1053, %v1101
    %v1103 = vand.u32 %v1102, 4294901760
    %v1104 = vsub.f32 %v1102, %v1103
    %v1105 = vand.u32 %v1104, 4294901760
    %1106 = vmatpush.msra.mxu0 %v1105
    %v1107 = vand.u32 %v1052, 4294901760
    %v1108 = vsub.f32 %v1052, %v1107
    %v1109 = vand.u32 %v1108, 4294901760
    %v1110 = vsub.f32 %v1108, %v1109
    %v1111 = vand.u32 %v1110, 4294901760
    %1112 = vmatpush.msra.mxu0 %v1111
    %v1113 = vand.u32 %v1051, 4294901760
    %v1114 = vsub.f32 %v1051, %v1113
    %v1115 = vand.u32 %v1114, 4294901760
    %v1116 = vsub.f32 %v1114, %v1115
    %v1117 = vand.u32 %v1116, 4294901760
    %1118 = vmatpush.msra.mxu0 %v1117
    %v1119 = vand.u32 %v1050, 4294901760
    %v1120 = vsub.f32 %v1050, %v1119
    %v1121 = vand.u32 %v1120, 4294901760
    %v1122 = vsub.f32 %v1120, %v1121
    %v1123 = vand.u32 %v1122, 4294901760
    %1124 = vmatpush.msra.mxu0 %v1123
    %v1125 = vand.u32 %v1058, 4294901760
    %1126 = vmatmul.f32.gmra.mxu0 %v1125
    %v1127 = vpop.f32.mrf.mxu0
    %v1128 = vadd.f32 %v1087, %v1127
    %1129 = vdwg.mxu0
    %1130 = vmatpush.msra.mxu0 0.0
    %1131 = vmatpush.msra.mxu0 0.0
    %1132 = vmatpush.msra.mxu0 0.0
    %1133 = vmatpush.msra.mxu0 0.0
    %1134 = vmatpush.msra.mxu0 0.0
    %1135 = vmatpush.msra.mxu0 0.0
    %1136 = vmatpush.msra.mxu0 0.0
    %1137 = vmatpush.msra.mxu0 0.0
    %1138 = vmatpush.msra.mxu0 0.0
    %1139 = vmatpush.msra.mxu0 0.0
    %1140 = vmatpush.msra.mxu0 0.0
    %1141 = vmatpush.msra.mxu0 0.0
    %v1142 = vand.u32 %v1053, 4294901760
    %v1143 = vsub.f32 %v1053, %v1142
    %1144 = vmatpush.msra.mxu0 %v1143
    %v1145 = vand.u32 %v1052, 4294901760
    %v1146 = vsub.f32 %v1052, %v1145
    %1147 = vmatpush.msra.mxu0 %v1146
    %v1148 = vand.u32 %v1051, 4294901760
    %v1149 = vsub.f32 %v1051, %v1148
    %1150 = vmatpush.msra.mxu0 %v1149
    %v1151 = vand.u32 %v1050, 4294901760
    %v1152 = vsub.f32 %v1050, %v1151
    %1153 = vmatpush.msra.mxu0 %v1152
    %v1154 = vand.u32 %v1058, 4294901760
    %v1155 = vsub.f32 %v1058, %v1154
    %1156 = vmatmul.f32.gmra.mxu0 %v1155
    %v1157 = vpop.f32.mrf.mxu0
    %v1158 = vadd.f32 %v1128, %v1157
    %1159 = vdwg.mxu0
    %1160 = vmatpush.msra.mxu0 0.0
    %1161 = vmatpush.msra.mxu0 0.0
    %1162 = vmatpush.msra.mxu0 0.0
    %1163 = vmatpush.msra.mxu0 0.0
    %1164 = vmatpush.msra.mxu0 0.0
    %1165 = vmatpush.msra.mxu0 0.0
    %1166 = vmatpush.msra.mxu0 0.0
    %1167 = vmatpush.msra.mxu0 0.0
    %1168 = vmatpush.msra.mxu0 0.0
    %1169 = vmatpush.msra.mxu0 0.0
    %1170 = vmatpush.msra.mxu0 0.0
    %1171 = vmatpush.msra.mxu0 0.0
    %v1172 = vand.u32 %v1053, 4294901760
    %1173 = vmatpush.msra.mxu0 %v1172
    %v1174 = vand.u32 %v1052, 4294901760
    %1175 = vmatpush.msra.mxu0 %v1174
    %v1176 = vand.u32 %v1051, 4294901760
    %1177 = vmatpush.msra.mxu0 %v1176
    %v1178 = vand.u32 %v1050, 4294901760
    %1179 = vmatpush.msra.mxu0 %v1178
    %v1180 = vand.u32 %v1058, 4294901760
    %v1181 = vsub.f32 %v1058, %v1180
    %v1182 = vand.u32 %v1181, 4294901760
    %1183 = vmatmul.f32.gmra.mxu0 %v1182
    %v1184 = vpop.f32.mrf.mxu0
    %v1185 = vadd.f32 %v1158, %v1184
    %1186 = vdwg.mxu0
    %1187 = vmatpush.msra.mxu0 0.0
    %1188 = vmatpush.msra.mxu0 0.0
    %1189 = vmatpush.msra.mxu0 0.0
    %1190 = vmatpush.msra.mxu0 0.0
    %1191 = vmatpush.msra.mxu0 0.0
    %1192 = vmatpush.msra.mxu0 0.0
    %1193 = vmatpush.msra.mxu0 0.0
    %1194 = vmatpush.msra.mxu0 0.0
    %1195 = vmatpush.msra.mxu0 0.0
    %1196 = vmatpush.msra.mxu0 0.0
    %1197 = vmatpush.msra.mxu0 0.0
    %1198 = vmatpush.msra.mxu0 0.0
    %v1199 = vand.u32 %v1053, 4294901760
    %v1200 = vsub.f32 %v1053, %v1199
    %v1201 = vand.u32 %v1200, 4294901760
    %1202 = vmatpush.msra.mxu0 %v1201
    %v1203 = vand.u32 %v1052, 4294901760
    %v1204 = vsub.f32 %v1052, %v1203
    %v1205 = vand.u32 %v1204, 4294901760
    %1206 = vmatpush.msra.mxu0 %v1205
    %v1207 = vand.u32 %v1051, 4294901760
    %v1208 = vsub.f32 %v1051, %v1207
    %v1209 = vand.u32 %v1208, 4294901760
    %1210 = vmatpush.msra.mxu0 %v1209
    %v1211 = vand.u32 %v1050, 4294901760
    %v1212 = vsub.f32 %v1050, %v1211
    %v1213 = vand.u32 %v1212, 4294901760
    %1214 = vmatpush.msra.mxu0 %v1213
    %v1215 = vand.u32 %v1058, 4294901760
    %1216 = vmatmul.f32.gmra.mxu0 %v1215
    %v1217 = vpop.f32.mrf.mxu0
    %v1218 = vadd.f32 %v1185, %v1217
    %1219 = vdwg.mxu0
    %1220 = vmatpush.msra.mxu0 0.0
    %1221 = vmatpush.msra.mxu0 0.0
    %1222 = vmatpush.msra.mxu0 0.0
    %1223 = vmatpush.msra.mxu0 0.0
    %1224 = vmatpush.msra.mxu0 0.0
    %1225 = vmatpush.msra.mxu0 0.0
    %1226 = vmatpush.msra.mxu0 0.0
    %1227 = vmatpush.msra.mxu0 0.0
    %1228 = vmatpush.msra.mxu0 0.0
    %1229 = vmatpush.msra.mxu0 0.0
    %1230 = vmatpush.msra.mxu0 0.0
    %1231 = vmatpush.msra.mxu0 0.0
    %v1232 = vand.u32 %v1053, 4294901760
    %1233 = vmatpush.msra.mxu0 %v1232
    %v1234 = vand.u32 %v1052, 4294901760
    %1235 = vmatpush.msra.mxu0 %v1234
    %v1236 = vand.u32 %v1051, 4294901760
    %1237 = vmatpush.msra.mxu0 %v1236
    %v1238 = vand.u32 %v1050, 4294901760
    %1239 = vmatpush.msra.mxu0 %v1238
    %v1240 = vand.u32 %v1058, 4294901760
    %1241 = vmatmul.f32.gmra.mxu0 %v1240
    %v1242 = vpop.f32.mrf.mxu0
    %v1243 = vadd.f32 %v1218, %v1242
    %1244 = vdwg.mxu0
    %s1245 = scalar_lea.vmem [#allocation6], 192
    %v1246 = vld [vmem:[%s1245] sm:$0xff]
    %v1247 = vld [vmem:[%s1245 + $0x8] sm:$0xff]
    %v1248 = vld [vmem:[%s1245 + $0x10] sm:$0xff]
    %v1249 = vld [vmem:[%s1245 + $0x18] sm:$0xff]
    %v1250 = vld [vmem:[#allocation8 + $0x8] sm:$0x1]
    %v1251 = vrot.slane %v72, 1
    %v1252 = vsel %vm84, %v1251, 0
    %1254 = vmatpush.msra.mxu0 0.0
    %1255 = vmatpush.msra.mxu0 0.0
    %1256 = vmatpush.msra.mxu0 0.0
    %1257 = vmatpush.msra.mxu0 0.0
    %1258 = vmatpush.msra.mxu0 0.0
    %1259 = vmatpush.msra.mxu0 0.0
    %1260 = vmatpush.msra.mxu0 0.0
    %1261 = vmatpush.msra.mxu0 0.0
    %1262 = vmatpush.msra.mxu0 0.0
    %1263 = vmatpush.msra.mxu0 0.0
    %1264 = vmatpush.msra.mxu0 0.0
    %1265 = vmatpush.msra.mxu0 0.0
    %v1266 = vand.u32 %v1249, 4294901760
    %1267 = vmatpush.msra.mxu0 %v1266
    %v1268 = vand.u32 %v1248, 4294901760
    %1269 = vmatpush.msra.mxu0 %v1268
    %v1270 = vand.u32 %v1247, 4294901760
    %1271 = vmatpush.msra.mxu0 %v1270
    %v1272 = vand.u32 %v1246, 4294901760
    %1273 = vmatpush.msra.mxu0 %v1272
    %v1274 = vand.u32 %v1252, 4294901760
    %v1275 = vsub.f32 %v1252, %v1274
    %v1276 = vand.u32 %v1275, 4294901760
    %v1277 = vsub.f32 %v1275, %v1276
    %v1278 = vand.u32 %v1277, 4294901760
    %1279 = vmatmul.f32.gmra.mxu0 %v1278
    %v1280 = vpop.f32.mrf.mxu0
    %v1281 = vadd.f32 %v1250, %v1280
    %1282 = vdwg.mxu0
    %1283 = vmatpush.msra.mxu0 0.0
    %1284 = vmatpush.msra.mxu0 0.0
    %1285 = vmatpush.msra.mxu0 0.0
    %1286 = vmatpush.msra.mxu0 0.0
    %1287 = vmatpush.msra.mxu0 0.0
    %1288 = vmatpush.msra.mxu0 0.0
    %1289 = vmatpush.msra.mxu0 0.0
    %1290 = vmatpush.msra.mxu0 0.0
    %1291 = vmatpush.msra.mxu0 0.0
    %1292 = vmatpush.msra.mxu0 0.0
    %1293 = vmatpush.msra.mxu0 0.0
    %1294 = vmatpush.msra.mxu0 0.0
    %v1295 = vand.u32 %v1249, 4294901760
    %v1296 = vsub.f32 %v1249, %v1295
    %v1297 = vand.u32 %v1296, 4294901760
    %v1298 = vsub.f32 %v1296, %v1297
    %v1299 = vand.u32 %v1298, 4294901760
    %1300 = vmatpush.msra.mxu0 %v1299
    %v1301 = vand.u32 %v1248, 4294901760
    %v1302 = vsub.f32 %v1248, %v1301
    %v1303 = vand.u32 %v1302, 4294901760
    %v1304 = vsub.f32 %v1302, %v1303
    %v1305 = vand.u32 %v1304, 4294901760
    %1306 = vmatpush.msra.mxu0 %v1305
    %v1307 = vand.u32 %v1247, 4294901760
    %v1308 = vsub.f32 %v1247, %v1307
    %v1309 = vand.u32 %v1308, 4294901760
    %v1310 = vsub.f32 %v1308, %v1309
    %v1311 = vand.u32 %v1310, 4294901760
    %1312 = vmatpush.msra.mxu0 %v1311
    %v1313 = vand.u32 %v1246, 4294901760
    %v1314 = vsub.f32 %v1246, %v1313
    %v1315 = vand.u32 %v1314, 4294901760
    %v1316 = vsub.f32 %v1314, %v1315
    %v1317 = vand.u32 %v1316, 4294901760
    %1318 = vmatpush.msra.mxu0 %v1317
    %v1319 = vand.u32 %v1252, 4294901760
    %1320 = vmatmul.f32.gmra.mxu0 %v1319
    %v1321 = vpop.f32.mrf.mxu0
    %v1322 = vadd.f32 %v1281, %v1321
    %1323 = vdwg.mxu0
    %1324 = vmatpush.msra.mxu0 0.0
    %1325 = vmatpush.msra.mxu0 0.0
    %1326 = vmatpush.msra.mxu0 0.0
    %1327 = vmatpush.msra.mxu0 0.0
    %1328 = vmatpush.msra.mxu0 0.0
    %1329 = vmatpush.msra.mxu0 0.0
    %1330 = vmatpush.msra.mxu0 0.0
    %1331 = vmatpush.msra.mxu0 0.0
    %1332 = vmatpush.msra.mxu0 0.0
    %1333 = vmatpush.msra.mxu0 0.0
    %1334 = vmatpush.msra.mxu0 0.0
    %1335 = vmatpush.msra.mxu0 0.0
    %v1336 = vand.u32 %v1249, 4294901760
    %v1337 = vsub.f32 %v1249, %v1336
    %1338 = vmatpush.msra.mxu0 %v1337
    %v1339 = vand.u32 %v1248, 4294901760
    %v1340 = vsub.f32 %v1248, %v1339
    %1341 = vmatpush.msra.mxu0 %v1340
    %v1342 = vand.u32 %v1247, 4294901760
    %v1343 = vsub.f32 %v1247, %v1342
    %1344 = vmatpush.msra.mxu0 %v1343
    %v1345 = vand.u32 %v1246, 4294901760
    %v1346 = vsub.f32 %v1246, %v1345
    %1347 = vmatpush.msra.mxu0 %v1346
    %v1348 = vand.u32 %v1252, 4294901760
    %v1349 = vsub.f32 %v1252, %v1348
    %1350 = vmatmul.f32.gmra.mxu0 %v1349
    %v1351 = vpop.f32.mrf.mxu0
    %v1352 = vadd.f32 %v1322, %v1351
    %1353 = vdwg.mxu0
    %1354 = vmatpush.msra.mxu0 0.0
    %1355 = vmatpush.msra.mxu0 0.0
    %1356 = vmatpush.msra.mxu0 0.0
    %1357 = vmatpush.msra.mxu0 0.0
    %1358 = vmatpush.msra.mxu0 0.0
    %1359 = vmatpush.msra.mxu0 0.0
    %1360 = vmatpush.msra.mxu0 0.0
    %1361 = vmatpush.msra.mxu0 0.0
    %1362 = vmatpush.msra.mxu0 0.0
    %1363 = vmatpush.msra.mxu0 0.0
    %1364 = vmatpush.msra.mxu0 0.0
    %1365 = vmatpush.msra.mxu0 0.0
    %v1366 = vand.u32 %v1249, 4294901760
    %1367 = vmatpush.msra.mxu0 %v1366
    %v1368 = vand.u32 %v1248, 4294901760
    %1369 = vmatpush.msra.mxu0 %v1368
    %v1370 = vand.u32 %v1247, 4294901760
    %1371 = vmatpush.msra.mxu0 %v1370
    %v1372 = vand.u32 %v1246, 4294901760
    %1373 = vmatpush.msra.mxu0 %v1372
    %v1374 = vand.u32 %v1252, 4294901760
    %v1375 = vsub.f32 %v1252, %v1374
    %v1376 = vand.u32 %v1375, 4294901760
    %1377 = vmatmul.f32.gmra.mxu0 %v1376
    %v1378 = vpop.f32.mrf.mxu0
    %v1379 = vadd.f32 %v1352, %v1378
    %1380 = vdwg.mxu0
    %1381 = vmatpush.msra.mxu0 0.0
    %1382 = vmatpush.msra.mxu0 0.0
    %1383 = vmatpush.msra.mxu0 0.0
    %1384 = vmatpush.msra.mxu0 0.0
    %1385 = vmatpush.msra.mxu0 0.0
    %1386 = vmatpush.msra.mxu0 0.0
    %1387 = vmatpush.msra.mxu0 0.0
    %1388 = vmatpush.msra.mxu0 0.0
    %1389 = vmatpush.msra.mxu0 0.0
    %1390 = vmatpush.msra.mxu0 0.0
    %1391 = vmatpush.msra.mxu0 0.0
    %1392 = vmatpush.msra.mxu0 0.0
    %v1393 = vand.u32 %v1249, 4294901760
    %v1394 = vsub.f32 %v1249, %v1393
    %v1395 = vand.u32 %v1394, 4294901760
    %1396 = vmatpush.msra.mxu0 %v1395
    %v1397 = vand.u32 %v1248, 4294901760
    %v1398 = vsub.f32 %v1248, %v1397
    %v1399 = vand.u32 %v1398, 4294901760
    %1400 = vmatpush.msra.mxu0 %v1399
    %v1401 = vand.u32 %v1247, 4294901760
    %v1402 = vsub.f32 %v1247, %v1401
    %v1403 = vand.u32 %v1402, 4294901760
    %1404 = vmatpush.msra.mxu0 %v1403
    %v1405 = vand.u32 %v1246, 4294901760
    %v1406 = vsub.f32 %v1246, %v1405
    %v1407 = vand.u32 %v1406, 4294901760
    %1408 = vmatpush.msra.mxu0 %v1407
    %v1409 = vand.u32 %v1252, 4294901760
    %1410 = vmatmul.f32.gmra.mxu0 %v1409
    %v1411 = vpop.f32.mrf.mxu0
    %v1412 = vadd.f32 %v1379, %v1411
    %1413 = vdwg.mxu0
    %1414 = vmatpush.msra.mxu0 0.0
    %1415 = vmatpush.msra.mxu0 0.0
    %1416 = vmatpush.msra.mxu0 0.0
    %1417 = vmatpush.msra.mxu0 0.0
    %1418 = vmatpush.msra.mxu0 0.0
    %1419 = vmatpush.msra.mxu0 0.0
    %1420 = vmatpush.msra.mxu0 0.0
    %1421 = vmatpush.msra.mxu0 0.0
    %1422 = vmatpush.msra.mxu0 0.0
    %1423 = vmatpush.msra.mxu0 0.0
    %1424 = vmatpush.msra.mxu0 0.0
    %1425 = vmatpush.msra.mxu0 0.0
    %v1426 = vand.u32 %v1249, 4294901760
    %1427 = vmatpush.msra.mxu0 %v1426
    %v1428 = vand.u32 %v1248, 4294901760
    %1429 = vmatpush.msra.mxu0 %v1428
    %v1430 = vand.u32 %v1247, 4294901760
    %1431 = vmatpush.msra.mxu0 %v1430
    %v1432 = vand.u32 %v1246, 4294901760
    %1433 = vmatpush.msra.mxu0 %v1432
    %v1434 = vand.u32 %v1252, 4294901760
    %1435 = vmatmul.f32.gmra.mxu0 %v1434
    %v1436 = vpop.f32.mrf.mxu0
    %v1437 = vadd.f32 %v1412, %v1436
    %1438 = vdwg.mxu0
    %v1439 = vadd.f32 %v1243, %v1437
    %v1440 = vmul.f32 %v1439, 0.5
    %v1441 = vtanh.pop %v1440
    %v1442 = vadd.f32 %v1441, 1.0
    %v1443 = vmul.f32 %v1442, 0.5
    %1445 = vrot.lane.b32.xlu0 %v1437, 64
    %v1446 = vpop.permute.xlu0 %1445
    %v1448 = vmul.f32 %v1443, %v1446
    %1450 = vrot.lane.b32.xlu0 %v1448, 64
    %v1451 = vpop.permute.xlu0 %1450
    %v1453 = vadd.f32 %v1243, %v1451
    %v1454 = vtanh.pop %v1453
    %v1455 = vsub.f32 1.0, %v1443
    %1457 = vrot.lane.b32.xlu0 %v1454, 96
    %v1458 = vpop.permute.xlu0 %1457
    %v1460 = vmul.f32 %v1455, %v1458
    %1461 = vrot.lane.b32.xlu0 %v1251, 32
    %v1462 = vpop.permute.xlu0 %1461
    %v1464 = vmul.f32 %v1443, %v1462
    %v1465 = vadd.f32 %v1460, %v1464
    %v1467 = vrot.slane %v1465, 7
    %vm1469 = vcmask 1040384
    %v1470 = vsel %vm1469, %v1048, %v1467
    %1472 = vrot.lane.b32.xlu0 %v1470, 96
    %v1473 = vpop.permute.xlu0 %1472
    %vm1475 = vcmask 254976
    %1476 = vst.msk [vmem:[%s6] sm:$0x3] %vm1475, %v1473
    %s1477 = scalar_lea.vmem [#allocation6], 64
    %v1478 = vld [vmem:[%s1477] sm:$0xff]
    %v1479 = vld [vmem:[%s1477 + $0x8] sm:$0xff]
    %v1480 = vld [vmem:[%s1477 + $0x10] sm:$0xff]
    %v1481 = vld [vmem:[%s1477 + $0x18] sm:$0xff]
    %1482 = vrot.lane.b32.xlu0 %v1465, 96
    %v1483 = vpop.permute.xlu0 %1482
    %v1484 = vsel %vm84, %v1483, 0
    %1486 = vmatpush.msra.mxu0 0.0
    %1487 = vmatpush.msra.mxu0 0.0
    %1488 = vmatpush.msra.mxu0 0.0
    %1489 = vmatpush.msra.mxu0 0.0
    %1490 = vmatpush.msra.mxu0 0.0
    %1491 = vmatpush.msra.mxu0 0.0
    %1492 = vmatpush.msra.mxu0 0.0
    %1493 = vmatpush.msra.mxu0 0.0
    %1494 = vmatpush.msra.mxu0 0.0
    %1495 = vmatpush.msra.mxu0 0.0
    %1496 = vmatpush.msra.mxu0 0.0
    %1497 = vmatpush.msra.mxu0 0.0
    %v1498 = vand.u32 %v1481, 4294901760
    %1499 = vmatpush.msra.mxu0 %v1498
    %v1500 = vand.u32 %v1480, 4294901760
    %1501 = vmatpush.msra.mxu0 %v1500
    %v1502 = vand.u32 %v1479, 4294901760
    %1503 = vmatpush.msra.mxu0 %v1502
    %v1504 = vand.u32 %v1478, 4294901760
    %1505 = vmatpush.msra.mxu0 %v1504
    %v1506 = vand.u32 %v1484, 4294901760
    %v1507 = vsub.f32 %v1484, %v1506
    %v1508 = vand.u32 %v1507, 4294901760
    %v1509 = vsub.f32 %v1507, %v1508
    %v1510 = vand.u32 %v1509, 4294901760
    %1511 = vmatmul.f32.gmra.mxu0 %v1510
    %v1512 = vpop.f32.mrf.mxu0
    %v1513 = vadd.f32 %v77, %v1512
    %1514 = vdwg.mxu0
    %1515 = vmatpush.msra.mxu0 0.0
    %1516 = vmatpush.msra.mxu0 0.0
    %1517 = vmatpush.msra.mxu0 0.0
    %1518 = vmatpush.msra.mxu0 0.0
    %1519 = vmatpush.msra.mxu0 0.0
    %1520 = vmatpush.msra.mxu0 0.0
    %1521 = vmatpush.msra.mxu0 0.0
    %1522 = vmatpush.msra.mxu0 0.0
    %1523 = vmatpush.msra.mxu0 0.0
    %1524 = vmatpush.msra.mxu0 0.0
    %1525 = vmatpush.msra.mxu0 0.0
    %1526 = vmatpush.msra.mxu0 0.0
    %v1527 = vand.u32 %v1481, 4294901760
    %v1528 = vsub.f32 %v1481, %v1527
    %v1529 = vand.u32 %v1528, 4294901760
    %v1530 = vsub.f32 %v1528, %v1529
    %v1531 = vand.u32 %v1530, 4294901760
    %1532 = vmatpush.msra.mxu0 %v1531
    %v1533 = vand.u32 %v1480, 4294901760
    %v1534 = vsub.f32 %v1480, %v1533
    %v1535 = vand.u32 %v1534, 4294901760
    %v1536 = vsub.f32 %v1534, %v1535
    %v1537 = vand.u32 %v1536, 4294901760
    %1538 = vmatpush.msra.mxu0 %v1537
    %v1539 = vand.u32 %v1479, 4294901760
    %v1540 = vsub.f32 %v1479, %v1539
    %v1541 = vand.u32 %v1540, 4294901760
    %v1542 = vsub.f32 %v1540, %v1541
    %v1543 = vand.u32 %v1542, 4294901760
    %1544 = vmatpush.msra.mxu0 %v1543
    %v1545 = vand.u32 %v1478, 4294901760
    %v1546 = vsub.f32 %v1478, %v1545
    %v1547 = vand.u32 %v1546, 4294901760
    %v1548 = vsub.f32 %v1546, %v1547
    %v1549 = vand.u32 %v1548, 4294901760
    %1550 = vmatpush.msra.mxu0 %v1549
    %v1551 = vand.u32 %v1484, 4294901760
    %1552 = vmatmul.f32.gmra.mxu0 %v1551
    %v1553 = vpop.f32.mrf.mxu0
    %v1554 = vadd.f32 %v1513, %v1553
    %1555 = vdwg.mxu0
    %1556 = vmatpush.msra.mxu0 0.0
    %1557 = vmatpush.msra.mxu0 0.0
    %1558 = vmatpush.msra.mxu0 0.0
    %1559 = vmatpush.msra.mxu0 0.0
    %1560 = vmatpush.msra.mxu0 0.0
    %1561 = vmatpush.msra.mxu0 0.0
    %1562 = vmatpush.msra.mxu0 0.0
    %1563 = vmatpush.msra.mxu0 0.0
    %1564 = vmatpush.msra.mxu0 0.0
    %1565 = vmatpush.msra.mxu0 0.0
    %1566 = vmatpush.msra.mxu0 0.0
    %1567 = vmatpush.msra.mxu0 0.0
    %v1568 = vand.u32 %v1481, 4294901760
    %v1569 = vsub.f32 %v1481, %v1568
    %1570 = vmatpush.msra.mxu0 %v1569
    %v1571 = vand.u32 %v1480, 4294901760
    %v1572 = vsub.f32 %v1480, %v1571
    %1573 = vmatpush.msra.mxu0 %v1572
    %v1574 = vand.u32 %v1479, 4294901760
    %v1575 = vsub.f32 %v1479, %v1574
    %1576 = vmatpush.msra.mxu0 %v1575
    %v1577 = vand.u32 %v1478, 4294901760
    %v1578 = vsub.f32 %v1478, %v1577
    %1579 = vmatpush.msra.mxu0 %v1578
    %v1580 = vand.u32 %v1484, 4294901760
    %v1581 = vsub.f32 %v1484, %v1580
    %1582 = vmatmul.f32.gmra.mxu0 %v1581
    %v1583 = vpop.f32.mrf.mxu0
    %v1584 = vadd.f32 %v1554, %v1583
    %1585 = vdwg.mxu0
    %1586 = vmatpush.msra.mxu0 0.0
    %1587 = vmatpush.msra.mxu0 0.0
    %1588 = vmatpush.msra.mxu0 0.0
    %1589 = vmatpush.msra.mxu0 0.0
    %1590 = vmatpush.msra.mxu0 0.0
    %1591 = vmatpush.msra.mxu0 0.0
    %1592 = vmatpush.msra.mxu0 0.0
    %1593 = vmatpush.msra.mxu0 0.0
    %1594 = vmatpush.msra.mxu0 0.0
    %1595 = vmatpush.msra.mxu0 0.0
    %1596 = vmatpush.msra.mxu0 0.0
    %1597 = vmatpush.msra.mxu0 0.0
    %v1598 = vand.u32 %v1481, 4294901760
    %1599 = vmatpush.msra.mxu0 %v1598
    %v1600 = vand.u32 %v1480, 4294901760
    %1601 = vmatpush.msra.mxu0 %v1600
    %v1602 = vand.u32 %v1479, 4294901760
    %1603 = vmatpush.msra.mxu0 %v1602
    %v1604 = vand.u32 %v1478, 4294901760
    %1605 = vmatpush.msra.mxu0 %v1604
    %v1606 = vand.u32 %v1484, 4294901760
    %v1607 = vsub.f32 %v1484, %v1606
    %v1608 = vand.u32 %v1607, 4294901760
    %1609 = vmatmul.f32.gmra.mxu0 %v1608
    %v1610 = vpop.f32.mrf.mxu0
    %v1611 = vadd.f32 %v1584, %v1610
    %1612 = vdwg.mxu0
    %1613 = vmatpush.msra.mxu0 0.0
    %1614 = vmatpush.msra.mxu0 0.0
    %1615 = vmatpush.msra.mxu0 0.0
    %1616 = vmatpush.msra.mxu0 0.0
    %1617 = vmatpush.msra.mxu0 0.0
    %1618 = vmatpush.msra.mxu0 0.0
    %1619 = vmatpush.msra.mxu0 0.0
    %1620 = vmatpush.msra.mxu0 0.0
    %1621 = vmatpush.msra.mxu0 0.0
    %1622 = vmatpush.msra.mxu0 0.0
    %1623 = vmatpush.msra.mxu0 0.0
    %1624 = vmatpush.msra.mxu0 0.0
    %v1625 = vand.u32 %v1481, 4294901760
    %v1626 = vsub.f32 %v1481, %v1625
    %v1627 = vand.u32 %v1626, 4294901760
    %1628 = vmatpush.msra.mxu0 %v1627
    %v1629 = vand.u32 %v1480, 4294901760
    %v1630 = vsub.f32 %v1480, %v1629
    %v1631 = vand.u32 %v1630, 4294901760
    %1632 = vmatpush.msra.mxu0 %v1631
    %v1633 = vand.u32 %v1479, 4294901760
    %v1634 = vsub.f32 %v1479, %v1633
    %v1635 = vand.u32 %v1634, 4294901760
    %1636 = vmatpush.msra.mxu0 %v1635
    %v1637 = vand.u32 %v1478, 4294901760
    %v1638 = vsub.f32 %v1478, %v1637
    %v1639 = vand.u32 %v1638, 4294901760
    %1640 = vmatpush.msra.mxu0 %v1639
    %v1641 = vand.u32 %v1484, 4294901760
    %1642 = vmatmul.f32.gmra.mxu0 %v1641
    %v1643 = vpop.f32.mrf.mxu0
    %v1644 = vadd.f32 %v1611, %v1643
    %1645 = vdwg.mxu0
    %1646 = vmatpush.msra.mxu0 0.0
    %1647 = vmatpush.msra.mxu0 0.0
    %1648 = vmatpush.msra.mxu0 0.0
    %1649 = vmatpush.msra.mxu0 0.0
    %1650 = vmatpush.msra.mxu0 0.0
    %1651 = vmatpush.msra.mxu0 0.0
    %1652 = vmatpush.msra.mxu0 0.0
    %1653 = vmatpush.msra.mxu0 0.0
    %1654 = vmatpush.msra.mxu0 0.0
    %1655 = vmatpush.msra.mxu0 0.0
    %1656 = vmatpush.msra.mxu0 0.0
    %1657 = vmatpush.msra.mxu0 0.0
    %v1658 = vand.u32 %v1481, 4294901760
    %1659 = vmatpush.msra.mxu0 %v1658
    %v1660 = vand.u32 %v1480, 4294901760
    %1661 = vmatpush.msra.mxu0 %v1660
    %v1662 = vand.u32 %v1479, 4294901760
    %1663 = vmatpush.msra.mxu0 %v1662
    %v1664 = vand.u32 %v1478, 4294901760
    %1665 = vmatpush.msra.mxu0 %v1664
    %v1666 = vand.u32 %v1484, 4294901760
    %1667 = vmatmul.f32.gmra.mxu0 %v1666
    %v1668 = vpop.f32.mrf.mxu0
    %v1669 = vadd.f32 %v1644, %v1668
    %1670 = vdwg.mxu0
    %vm1671 = vcmask 24576
    %v1672 = vsel %vm1671, %v1669, -inf
    %1673 = vmax.xlane.f32.xlu0 %v1672
    %v1674 = vpop.xlane.xlu0 %1673
    %v1675 = vsub.f32 %v1669, %v1674
    %v1676 = vmul.f32 %v1675, 1.442695
    %v1677 = vpow.pop %v1676
    %v1678 = vsel %vm1671, %v1677, 0.0
    %1679 = vadd.xlane.f32.xlu0 %v1678
    %v1680 = vpop.xlane.xlu0 %1679
    %v1681 = vlog2.pop %v1680
    %v1682 = vmul.f32 %v1681, 0.6931472
    %v1683 = vadd.f32 %v1682, %v1674
    %v1684 = vsub.f32 %v1669, %v1683
    %1685 = vst.msk [vmem:[#allocation9] sm:$0x1] %vm1671, %v1684
    // Predicated region
    $region34: #{_lambda_.1} parent=1 // pred_check
      _
    $region35: #{_lambda_.1} parent=1 // pred_check_branch
      %1687 = sbr.rel (0) target = $region37
    $region36: #{_lambda_.1} parent=1 // pred_region
      %1689 = vsyncadd [#allocation5], 0
      %s1691 = sshll.u32 [#allocation9], 4
      %s1692 = int_to_ptr.vmem [resolvable:$true] %s1691
      %s1693 = sshll.u32 %s5, 4
      %s1694 = int_to_ptr.hbm [resolvable:$true] %s1693
      %1696 = dma.vmem_to_hbm [thread:$0]  %s1692, 16, %s1694, [#allocation5]
    $region37: #{_lambda_.1} parent=1 // pred_fallthru
      _
    // Predicated region
    $region38: #{_lambda_.1} parent=1 // pred_check
      _
    $region39: #{_lambda_.1} parent=1 // pred_check_branch
      %1698 = sbr.rel (0) target = $region41
    $region40: #{_lambda_.1} parent=1 // pred_region
      _
    $region41: #{_lambda_.1} parent=1 // pred_fallthru
      _
    // Predicated region
    $region42: #{_lambda_.1} parent=1 // pred_check
      _
    $region43: #{_lambda_.1} parent=1 // pred_check_branch
      %1700 = sbr.rel (0) target = $region45
    $region44: #{_lambda_.1} parent=1 // pred_region
      %1702 = vsyncadd [#allocation11], 0
      %s1704 = sshll.u32 [#allocation10], 4
      %s1705 = int_to_ptr.vmem [resolvable:$true] %s1704
      %s1706 = sshll.u32 %s7, 4
      %s1707 = int_to_ptr.hbm [resolvable:$true] %s1706
      %1709 = dma.vmem_to_hbm [thread:$0]  %s1705, 16, %s1707, [#allocation11]
    $region45: #{_lambda_.1} parent=1 // pred_fallthru
      _
    // Predicated region
    $region46: #{_lambda_.1} parent=1 // pred_check
      _
    $region47: #{_lambda_.1} parent=1 // pred_check_branch
      %1711 = sbr.rel (0) target = $region49
    $region48: #{_lambda_.1} parent=1 // pred_region
      %1713 = dma.done [#allocation5], 16
    $region49: #{_lambda_.1} parent=1 // pred_fallthru
      _
    // Predicated region
    $region50: #{_lambda_.1} parent=1 // pred_check
      _
    $region51: #{_lambda_.1} parent=1 // pred_check_branch
      %1715 = sbr.rel (0) target = $region53
    $region52: #{_lambda_.1} parent=1 // pred_region
      _
    $region53: #{_lambda_.1} parent=1 // pred_fallthru
      _
    // Predicated region
    $region54: #{_lambda_.1} parent=1 // pred_check
      _
    $region55: #{_lambda_.1} parent=1 // pred_check_branch
      %1717 = sbr.rel (0) target = $region57
    $region56: #{_lambda_.1} parent=1 // pred_region
      %1719 = dma.done [#allocation11], 16
    $region57: #{_lambda_.1} parent=1 // pred_fallthru
      _
    %1720 = vsyncpa [#allocation4], 1
    %1721 = vsyncpa [#allocation7], 1
    %1722 = vsyncpa [#allocation5], 1
    %1723 = vsyncpa [#allocation11], 1

</llo_original>
